<compile_context>
chip_gen: v7x
topology: tpu7x:2x2x1
jax: 0.10.0
libtpu: 0.0.40
codegen_flags: <defaults>
</compile_context>

<pallas_src>
import jax
import jax.numpy as jnp
from jax.experimental import pallas as pl
from jax.experimental.pallas import tpu as pltpu

K = 3            # DDF kernel size
KK = K * K       # 9 taps


# ----------------------------------------------------------------------------
# Pallas kernel: MXU 1x1 conv + sigmoid, roll-based 3x3 taps, fused epilogue
# ----------------------------------------------------------------------------
def _make_ddf_kernel(C, H, W, fuse_relu, fuse_residual):
    HW = H * W
    # Flat-index offset of each tap's source pixel and the circular roll that
    # realizes it; the wrap-around garbage is killed by the boundary masks.
    shifts = []
    for kk in range(KK):
        dy, dx = kk // K - 1, kk % K - 1
        off = dy * W + dx                      # source = p + off
        shifts.append((-off) % HW)             # roll amount (jnp.roll semantics)

    def kernel(*refs):
        if fuse_residual:
            x_ref, ws_ref, bs_ref, m_ref, cf_ref, res_ref, o_ref = refs
        else:
            x_ref, ws_ref, bs_ref, m_ref, cf_ref, o_ref = refs
            res_ref = None

        x = x_ref[0].astype(jnp.float32)       # (C, HW)  lane-dense
        ws = ws_ref[...].astype(jnp.float32)   # (KK, C)  spatial 1x1 conv weight
        bs = bs_ref[...].astype(jnp.float32)   # (KK, 1)  spatial 1x1 conv bias
        mask = m_ref[...]                      # (KK, HW) {0,1} unfold-padding mask
        cf = cf_ref[0].astype(jnp.float32)     # (C, KK)  per-batch channel filter

        # Spatial branch: 1x1 conv over channels on the MXU + sigmoid.
        # The zero-padding boundary of the 3x3 unfold is folded into the
        # spatial filter so the circular rolls below need no extra handling.
        s = jax.nn.sigmoid(
            jnp.dot(ws, x, preferred_element_type=jnp.float32) + bs) * mask

        acc = jnp.zeros((C, HW), jnp.float32)
        for kk in range(KK):
            shifted = x if shifts[kk] == 0 else pltpu.roll(x, shifts[kk], axis=1)
            acc = acc + shifted * s[kk:kk + 1, :] * cf[:, kk:kk + 1]

        if fuse_relu:                          # conv1 + relu1 fused
            acc = jnp.maximum(acc, 0.0)
        if fuse_residual:                      # conv2 + residual add fused
            acc = acc + res_ref[0].astype(jnp.float32)
        o_ref[0] = acc.astype(o_ref.dtype)

    return kernel


def _tap_masks(H, W):
    """(KK, H*W) {0,1} mask: 1 where the 3x3 tap's source pixel is in-bounds."""
    hh = jnp.arange(H, dtype=jnp.int32).reshape(H, 1)
    ww = jnp.arange(W, dtype=jnp.int32).reshape(1, W)
    rows = []
    for kk in range(KK):
        dy, dx = kk // K - 1, kk % K - 1
        valid = ((hh + dy >= 0) & (hh + dy < H) &
                 (ww + dx >= 0) & (ww + dx < W))
        rows.append(valid.reshape(-1))
    return jnp.stack(rows).astype(jnp.float32)


def ddf_apply(x, ws, bs, cf, *, fuse_relu, residual=None):
    """x: (B,C,H,W), ws: (9,C), bs: (9,), cf: (B,C,9) -> (B,C,H,W)."""
    B, C, H, W = x.shape
    HW = H * W
    x_flat = x.reshape(B, C, HW)               # lane-dense last dim (multiple of 128)
    masks = _tap_masks(H, W)
    kernel = _make_ddf_kernel(C, H, W, fuse_relu, residual is not None)

    img_spec = pl.BlockSpec((1, C, HW), lambda b: (b, 0, 0))
    in_specs = [
        img_spec,                                        # x
        pl.BlockSpec((KK, C), lambda b: (0, 0)),         # ws
        pl.BlockSpec((KK, 1), lambda b: (0, 0)),         # bs
        pl.BlockSpec((KK, HW), lambda b: (0, 0)),        # boundary masks
        pl.BlockSpec((1, C, KK), lambda b: (b, 0, 0)),   # channel filter
    ]
    inputs = [x_flat, ws, bs.reshape(KK, 1), masks, cf]
    if residual is not None:
        in_specs.append(img_spec)
        inputs.append(residual.reshape(B, C, HW))

    # Scoped-VMEM limit sized to the actual block footprint (double-buffered
    # image blocks + f32 temporaries), instead of relying on the 16/32 MiB default.
    block_bytes = C * HW * 4
    vmem_limit = int(min(100 << 20, max(32 << 20, 12 * block_bytes)))

    # TODO(synk): for production-size C*H*W, add a halo'd spatial grid axis
    # (grid=(B, H//TH), marked "parallel") so the per-step footprint stays under
    # v7x's 64 MiB VMEM and both v7x TensorCores get work at small batch.
    out = pl.pallas_call(
        kernel,
        out_shape=jax.ShapeDtypeStruct((B, C, HW), x.dtype),
        grid_spec=pltpu.PrefetchScalarGridSpec(
            num_scalar_prefetch=0,
            grid=(B,),
            in_specs=in_specs,
            out_specs=img_spec,
        ),
        compiler_params=pltpu.CompilerParams(
            dimension_semantics=("parallel",),
            vmem_limit_bytes=vmem_limit),
    )(*inputs)
    return out.reshape(B, C, H, W)


# ----------------------------------------------------------------------------
# Channel branch glue (global avg pool + two tiny 1x1 convs on 1x1 spatial)
# ----------------------------------------------------------------------------
def channel_branch(x, w1, b1, w2, b2):
    B, C, _, _ = x.shape
    p = jnp.mean(x, axis=(2, 3))                        # AdaptiveAvgPool2d((1,1))
    h = jnp.maximum(p @ w1.T + b1, 0.0)                 # Conv1x1 + ReLU
    cf = jax.nn.sigmoid(h @ w2.T + b2)                  # Conv1x1 + Sigmoid
    return cf.reshape(B, C, KK)                         # (B, C, 9)


def ddf_conv2d(x, params, *, fuse_relu, residual=None):
    ws, bs, w1c, b1c, w2c, b2c = params
    cf = channel_branch(x, w1c, b1c, w2c, b2c)
    return ddf_apply(x, ws, bs, cf, fuse_relu=fuse_relu, residual=residual)


def res_block(x, params1, params2):
    r = ddf_conv2d(x, params1, fuse_relu=True)                   # conv1 + relu1
    return ddf_conv2d(r, params2, fuse_relu=False, residual=x)   # conv2 + residual


# ----------------------------------------------------------------------------
# Pure-JAX reference (for correctness check)
# ----------------------------------------------------------------------------
def _ddf_ref(x, params):
    ws, bs, w1c, b1c, w2c, b2c = params
    B, C, H, W = x.shape
    cf = channel_branch(x, w1c, b1c, w2c, b2c)                                  # (B,C,9)
    s = jax.nn.sigmoid(
        jnp.einsum('kc,bchw->bkhw', ws, x, precision='highest')
        + bs[None, :, None, None])
    xpad = jnp.pad(x, ((0, 0), (0, 0), (1, 1), (1, 1)))
    out = jnp.zeros_like(x)
    for kk in range(KK):
        dy, dx = kk // K, kk % K
        shifted = xpad[:, :, dy:dy + H, dx:dx + W]
        out = out + shifted * s[:, kk][:, None] * cf[:, :, kk][:, :, None, None]
    return out


def _res_block_ref(x, params1, params2):
    r = jnp.maximum(_ddf_ref(x, params1), 0.0)
    r = _ddf_ref(r, params2)
    return x + r


# ----------------------------------------------------------------------------
# Deterministic parameter init (shapes from DDF_Conv2D.__init__)
# ----------------------------------------------------------------------------
def init_ddf_params(key, C):
    mid = int(C * 0.2)   # se_ratio = 0.2
    ks = jax.random.split(key, 6)
    scale = 0.1
    ws = scale * jax.random.normal(ks[0], (KK, C), jnp.float32)           # spatial 1x1 conv
    bs = scale * jax.random.normal(ks[1], (KK,), jnp.float32)
    w1c = scale * jax.random.normal(ks[2], (mid, C), jnp.float32)         # channel 1x1 conv #1
    b1c = scale * jax.random.normal(ks[3], (mid,), jnp.float32)
    w2c = scale * jax.random.normal(ks[4], (C * KK, mid), jnp.float32)    # channel 1x1 conv #2
    b2c = scale * jax.random.normal(ks[5], (C * KK,), jnp.float32)
    return (ws, bs, w1c, b1c, w2c, b2c)


if __name__ == "__main__":
    B, C, H, W = 2, 8, 16, 16   # C=8 so mid_channels = int(8*0.2) = 1 > 0; H*W = 256 lanes

    key = jax.random.PRNGKey(0)
    kx, k1, k2 = jax.random.split(key, 3)
    x = jax.random.normal(kx, (B, C, H, W), jnp.float32)
    params1 = init_ddf_params(k1, C)
    params2 = init_ddf_params(k2, C)

    out = jax.jit(res_block)(x, params1, params2)
    out = jax.block_until_ready(out)

    ref = _res_block_ref(x, params1, params2)
    assert out.shape == (B, C, H, W)
    # Tolerance accounts for default MXU matmul precision (bf16 passes) in the
    # in-kernel spatial 1x1 conv vs the highest-precision XLA reference einsum.
    assert jnp.allclose(out, ref, rtol=1e-2, atol=1e-2), float(jnp.max(jnp.abs(out - ref)))

    print("KERNEL_OK")
</pallas_src>

<mosaic_0001>
module attributes {stable_mosaic.version = 11 : i64} {
  func.func @kernel(%arg0: i32, %arg1: memref<1x8x256xf32, #tpu.memory_space<vmem>>, %arg2: memref<9x8xf32, #tpu.memory_space<vmem>>, %arg3: memref<9x1xf32, #tpu.memory_space<vmem>>, %arg4: memref<9x256xf32, #tpu.memory_space<vmem>>, %arg5: memref<1x8x9xf32, #tpu.memory_space<vmem>>, %arg6: memref<1x8x256xf32, #tpu.memory_space<vmem>>) attributes {dimension_semantics = [#tpu.dimension_semantics<parallel>], iteration_bounds = array<i64: 2>, scalar_prefetch = 0 : i64, scratch_operands = 0 : i64, tpu.core_type = #tpu.core_type<tc>, window_params = [{transform_indices = @transform_0, window_bounds = array<i64: 1, 8, 256>}, {pipeline_mode = #tpu.pipeline_mode<synchronous>, transform_indices = @transform_1, window_bounds = array<i64: 9, 8>}, {pipeline_mode = #tpu.pipeline_mode<synchronous>, transform_indices = @transform_2, window_bounds = array<i64: 9, 1>}, {pipeline_mode = #tpu.pipeline_mode<synchronous>, transform_indices = @transform_3, window_bounds = array<i64: 9, 256>}, {transform_indices = @transform_4, window_bounds = array<i64: 1, 8, 9>}, {transform_indices = @transform_5, window_bounds = array<i64: 1, 8, 256>}]} {
    %c0 = arith.constant 0 : index
    %c0_0 = arith.constant 0 : index
    %c0_1 = arith.constant 0 : index
    %0 = vector.load %arg1[%c0, %c0_0, %c0_1] : memref<1x8x256xf32, #tpu.memory_space<vmem>>, vector<1x8x256xf32>
    %1 = vector.shape_cast %0 : vector<1x8x256xf32> to vector<8x256xf32>
    %c0_2 = arith.constant 0 : index
    %c0_3 = arith.constant 0 : index
    %2 = vector.load %arg2[%c0_2, %c0_3] : memref<9x8xf32, #tpu.memory_space<vmem>>, vector<9x8xf32>
    %c0_4 = arith.constant 0 : index
    %c0_5 = arith.constant 0 : index
    %3 = vector.load %arg3[%c0_4, %c0_5] : memref<9x1xf32, #tpu.memory_space<vmem>>, vector<9x1xf32>
    %c0_6 = arith.constant 0 : index
    %c0_7 = arith.constant 0 : index
    %4 = vector.load %arg4[%c0_6, %c0_7] : memref<9x256xf32, #tpu.memory_space<vmem>>, vector<9x256xf32>
    %c0_8 = arith.constant 0 : index
    %c0_9 = arith.constant 0 : index
    %c0_10 = arith.constant 0 : index
    %5 = vector.load %arg5[%c0_8, %c0_9, %c0_10] : memref<1x8x9xf32, #tpu.memory_space<vmem>>, vector<1x8x9xf32>
    %6 = vector.shape_cast %5 : vector<1x8x9xf32> to vector<8x9xf32>
    %cst = arith.constant dense<0.000000e+00> : vector<9x256xf32>
    %7 = tpu.matmul %2, %1, %cst {dimension_numbers = #tpu.dot_dimension_numbers<[1], [0], [0], [1], [0, 0, 1, 1], [], []>} : vector<9x8xf32>, vector<8x256xf32>, vector<9x256xf32> -> vector<9x256xf32>
    %8 = vector.broadcast %3 : vector<9x1xf32> to vector<9x256xf32>
    %9 = arith.addf %7, %8 : vector<9x256xf32>
    %10 = arith.negf %9 : vector<9x256xf32>
    %11 = math.exp %10 : vector<9x256xf32>
    %cst_11 = arith.constant 1.000000e+00 : f32
    %12 = vector.broadcast %cst_11 : f32 to vector<9x256xf32>
    %13 = arith.addf %12, %11 : vector<9x256xf32>
    %14 = arith.divf %12, %13 : vector<9x256xf32>
    %15 = arith.mulf %14, %4 : vector<9x256xf32>
    %cst_12 = arith.constant 0.000000e+00 : f32
    %16 = vector.broadcast %cst_12 : f32 to vector<8x256xf32>
    %c17_i32 = arith.constant 17 : i32
    %17 = tpu.dynamic_rotate %1 by %c17_i32 dim 1 : vector<8x256xf32>, i32 -> vector<8x256xf32>
    %18 = vector.extract_strided_slice %15 {offsets = [0, 0], sizes = [1, 256], strides = [1, 1]} : vector<9x256xf32> to vector<1x256xf32>
    %19 = vector.broadcast %18 : vector<1x256xf32> to vector<8x256xf32>
    %20 = arith.mulf %17, %19 : vector<8x256xf32>
    %21 = vector.extract_strided_slice %6 {offsets = [0, 0], sizes = [8, 1], strides = [1, 1]} : vector<8x9xf32> to vector<8x1xf32>
    %22 = vector.broadcast %21 : vector<8x1xf32> to vector<8x256xf32>
    %23 = arith.mulf %20, %22 : vector<8x256xf32>
    %24 = arith.addf %16, %23 : vector<8x256xf32>
    %c16_i32 = arith.constant 16 : i32
    %25 = tpu.dynamic_rotate %1 by %c16_i32 dim 1 : vector<8x256xf32>, i32 -> vector<8x256xf32>
    %26 = vector.extract_strided_slice %15 {offsets = [1, 0], sizes = [1, 256], strides = [1, 1]} : vector<9x256xf32> to vector<1x256xf32>
    %27 = vector.broadcast %26 : vector<1x256xf32> to vector<8x256xf32>
    %28 = arith.mulf %25, %27 : vector<8x256xf32>
    %29 = vector.extract_strided_slice %6 {offsets = [0, 1], sizes = [8, 1], strides = [1, 1]} : vector<8x9xf32> to vector<8x1xf32>
    %30 = vector.broadcast %29 : vector<8x1xf32> to vector<8x256xf32>
    %31 = arith.mulf %28, %30 : vector<8x256xf32>
    %32 = arith.addf %24, %31 : vector<8x256xf32>
    %c15_i32 = arith.constant 15 : i32
    %33 = tpu.dynamic_rotate %1 by %c15_i32 dim 1 : vector<8x256xf32>, i32 -> vector<8x256xf32>
    %34 = vector.extract_strided_slice %15 {offsets = [2, 0], sizes = [1, 256], strides = [1, 1]} : vector<9x256xf32> to vector<1x256xf32>
    %35 = vector.broadcast %34 : vector<1x256xf32> to vector<8x256xf32>
    %36 = arith.mulf %33, %35 : vector<8x256xf32>
    %37 = vector.extract_strided_slice %6 {offsets = [0, 2], sizes = [8, 1], strides = [1, 1]} : vector<8x9xf32> to vector<8x1xf32>
    %38 = vector.broadcast %37 : vector<8x1xf32> to vector<8x256xf32>
    %39 = arith.mulf %36, %38 : vector<8x256xf32>
    %40 = arith.addf %32, %39 : vector<8x256xf32>
    %c1_i32 = arith.constant 1 : i32
    %41 = tpu.dynamic_rotate %1 by %c1_i32 dim 1 : vector<8x256xf32>, i32 -> vector<8x256xf32>
    %42 = vector.extract_strided_slice %15 {offsets = [3, 0], sizes = [1, 256], strides = [1, 1]} : vector<9x256xf32> to vector<1x256xf32>
    %43 = vector.broadcast %42 : vector<1x256xf32> to vector<8x256xf32>
    %44 = arith.mulf %41, %43 : vector<8x256xf32>
    %45 = vector.extract_strided_slice %6 {offsets = [0, 3], sizes = [8, 1], strides = [1, 1]} : vector<8x9xf32> to vector<8x1xf32>
    %46 = vector.broadcast %45 : vector<8x1xf32> to vector<8x256xf32>
    %47 = arith.mulf %44, %46 : vector<8x256xf32>
    %48 = arith.addf %40, %47 : vector<8x256xf32>
    %49 = vector.extract_strided_slice %15 {offsets = [4, 0], sizes = [1, 256], strides = [1, 1]} : vector<9x256xf32> to vector<1x256xf32>
    %50 = vector.broadcast %49 : vector<1x256xf32> to vector<8x256xf32>
    %51 = arith.mulf %1, %50 : vector<8x256xf32>
    %52 = vector.extract_strided_slice %6 {offsets = [0, 4], sizes = [8, 1], strides = [1, 1]} : vector<8x9xf32> to vector<8x1xf32>
    %53 = vector.broadcast %52 : vector<8x1xf32> to vector<8x256xf32>
    %54 = arith.mulf %51, %53 : vector<8x256xf32>
    %55 = arith.addf %48, %54 : vector<8x256xf32>
    %c255_i32 = arith.constant 255 : i32
    %56 = tpu.dynamic_rotate %1 by %c255_i32 dim 1 : vector<8x256xf32>, i32 -> vector<8x256xf32>
    %57 = vector.extract_strided_slice %15 {offsets = [5, 0], sizes = [1, 256], strides = [1, 1]} : vector<9x256xf32> to vector<1x256xf32>
    %58 = vector.broadcast %57 : vector<1x256xf32> to vector<8x256xf32>
    %59 = arith.mulf %56, %58 : vector<8x256xf32>
    %60 = vector.extract_strided_slice %6 {offsets = [0, 5], sizes = [8, 1], strides = [1, 1]} : vector<8x9xf32> to vector<8x1xf32>
    %61 = vector.broadcast %60 : vector<8x1xf32> to vector<8x256xf32>
    %62 = arith.mulf %59, %61 : vector<8x256xf32>
    %63 = arith.addf %55, %62 : vector<8x256xf32>
    %c241_i32 = arith.constant 241 : i32
    %64 = tpu.dynamic_rotate %1 by %c241_i32 dim 1 : vector<8x256xf32>, i32 -> vector<8x256xf32>
    %65 = vector.extract_strided_slice %15 {offsets = [6, 0], sizes = [1, 256], strides = [1, 1]} : vector<9x256xf32> to vector<1x256xf32>
    %66 = vector.broadcast %65 : vector<1x256xf32> to vector<8x256xf32>
    %67 = arith.mulf %64, %66 : vector<8x256xf32>
    %68 = vector.extract_strided_slice %6 {offsets = [0, 6], sizes = [8, 1], strides = [1, 1]} : vector<8x9xf32> to vector<8x1xf32>
    %69 = vector.broadcast %68 : vector<8x1xf32> to vector<8x256xf32>
    %70 = arith.mulf %67, %69 : vector<8x256xf32>
    %71 = arith.addf %63, %70 : vector<8x256xf32>
    %c240_i32 = arith.constant 240 : i32
    %72 = tpu.dynamic_rotate %1 by %c240_i32 dim 1 : vector<8x256xf32>, i32 -> vector<8x256xf32>
    %73 = vector.extract_strided_slice %15 {offsets = [7, 0], sizes = [1, 256], strides = [1, 1]} : vector<9x256xf32> to vector<1x256xf32>
    %74 = vector.broadcast %73 : vector<1x256xf32> to vector<8x256xf32>
    %75 = arith.mulf %72, %74 : vector<8x256xf32>
    %76 = vector.extract_strided_slice %6 {offsets = [0, 7], sizes = [8, 1], strides = [1, 1]} : vector<8x9xf32> to vector<8x1xf32>
    %77 = vector.broadcast %76 : vector<8x1xf32> to vector<8x256xf32>
    %78 = arith.mulf %75, %77 : vector<8x256xf32>
    %79 = arith.addf %71, %78 : vector<8x256xf32>
    %c239_i32 = arith.constant 239 : i32
    %80 = tpu.dynamic_rotate %1 by %c239_i32 dim 1 : vector<8x256xf32>, i32 -> vector<8x256xf32>
    %81 = vector.extract_strided_slice %15 {offsets = [8, 0], sizes = [1, 256], strides = [1, 1]} : vector<9x256xf32> to vector<1x256xf32>
    %82 = vector.broadcast %81 : vector<1x256xf32> to vector<8x256xf32>
    %83 = arith.mulf %80, %82 : vector<8x256xf32>
    %84 = vector.extract_strided_slice %6 {offsets = [0, 8], sizes = [8, 1], strides = [1, 1]} : vector<8x9xf32> to vector<8x1xf32>
    %85 = vector.broadcast %84 : vector<8x1xf32> to vector<8x256xf32>
    %86 = arith.mulf %83, %85 : vector<8x256xf32>
    %87 = arith.addf %79, %86 : vector<8x256xf32>
    %cst_13 = arith.constant 0.000000e+00 : f32
    %88 = vector.broadcast %cst_13 : f32 to vector<8x256xf32>
    %89 = arith.maximumf %87, %88 : vector<8x256xf32>
    %c0_14 = arith.constant 0 : index
    %c0_15 = arith.constant 0 : index
    %c0_16 = arith.constant 0 : index
    %90 = vector.load %arg6[%c0_14, %c0_15, %c0_16] : memref<1x8x256xf32, #tpu.memory_space<vmem>>, vector<1x8x256xf32>
    %91 = vector.shape_cast %90 : vector<1x8x256xf32> to vector<8x256xf32>
    %92 = vector.shape_cast %89 : vector<8x256xf32> to vector<1x8x256xf32>
    tpu.vector_store %arg6[%c0_14, %c0_15, %c0_16], %92 {strides = array<i32>} : memref<1x8x256xf32, #tpu.memory_space<vmem>>, vector<1x8x256xf32>,
    return
  }
  func.func @transform_0(%arg0: i32) -> (i32, i32, i32) {
    %c0_i32 = arith.constant 0 : i32
    %c0_i32_0 = arith.constant 0 : i32
    %c0_i32_1 = arith.constant 0 : i32
    return %arg0, %c0_i32, %c0_i32_0 : i32, i32, i32
  }
  func.func @transform_1(%arg0: i32) -> (i32, i32) {
    %c0_i32 = arith.constant 0 : i32
    %c0_i32_0 = arith.constant 0 : i32
    %c0_i32_1 = arith.constant 0 : i32
    return %c0_i32, %c0_i32_0 : i32, i32
  }
  func.func @transform_2(%arg0: i32) -> (i32, i32) {
    %c0_i32 = arith.constant 0 : i32
    %c0_i32_0 = arith.constant 0 : i32
    %c0_i32_1 = arith.constant 0 : i32
    return %c0_i32, %c0_i32_0 : i32, i32
  }
  func.func @transform_3(%arg0: i32) -> (i32, i32) {
    %c0_i32 = arith.constant 0 : i32
    %c0_i32_0 = arith.constant 0 : i32
    %c0_i32_1 = arith.constant 0 : i32
    return %c0_i32, %c0_i32_0 : i32, i32
  }
  func.func @transform_4(%arg0: i32) -> (i32, i32, i32) {
    %c0_i32 = arith.constant 0 : i32
    %c0_i32_0 = arith.constant 0 : i32
    %c0_i32_1 = arith.constant 0 : i32
    return %arg0, %c0_i32, %c0_i32_0 : i32, i32, i32
  }
  func.func @transform_5(%arg0: i32) -> (i32, i32, i32) {
    %c0_i32 = arith.constant 0 : i32
    %c0_i32_0 = arith.constant 0 : i32
    %c0_i32_1 = arith.constant 0 : i32
    return %arg0, %c0_i32, %c0_i32_0 : i32, i32, i32
  }
}

module attributes {stable_mosaic.version = 11 : i64} {
  func.func @kernel(%arg0: i32, %arg1: memref<1x8x256xf32, #tpu.memory_space<vmem>>, %arg2: memref<9x8xf32, #tpu.memory_space<vmem>>, %arg3: memref<9x1xf32, #tpu.memory_space<vmem>>, %arg4: memref<9x256xf32, #tpu.memory_space<vmem>>, %arg5: memref<1x8x9xf32, #tpu.memory_space<vmem>>, %arg6: memref<1x8x256xf32, #tpu.memory_space<vmem>>, %arg7: memref<1x8x256xf32, #tpu.memory_space<vmem>>) attributes {dimension_semantics = [#tpu.dimension_semantics<parallel>], iteration_bounds = array<i64: 2>, scalar_prefetch = 0 : i64, scratch_operands = 0 : i64, tpu.core_type = #tpu.core_type<tc>, window_params = [{transform_indices = @transform_0, window_bounds = array<i64: 1, 8, 256>}, {pipeline_mode = #tpu.pipeline_mode<synchronous>, transform_indices = @transform_1, window_bounds = array<i64: 9, 8>}, {pipeline_mode = #tpu.pipeline_mode<synchronous>, transform_indices = @transform_2, window_bounds = array<i64: 9, 1>}, {pipeline_mode = #tpu.pipeline_mode<synchronous>, transform_indices = @transform_3, window_bounds = array<i64: 9, 256>}, {transform_indices = @transform_4, window_bounds = array<i64: 1, 8, 9>}, {transform_indices = @transform_5, window_bounds = array<i64: 1, 8, 256>}, {transform_indices = @transform_6, window_bounds = array<i64: 1, 8, 256>}]} {
    %c0 = arith.constant 0 : index
    %c0_0 = arith.constant 0 : index
    %c0_1 = arith.constant 0 : index
    %0 = vector.load %arg1[%c0, %c0_0, %c0_1] : memref<1x8x256xf32, #tpu.memory_space<vmem>>, vector<1x8x256xf32>
    %1 = vector.shape_cast %0 : vector<1x8x256xf32> to vector<8x256xf32>
    %c0_2 = arith.constant 0 : index
    %c0_3 = arith.constant 0 : index
    %2 = vector.load %arg2[%c0_2, %c0_3] : memref<9x8xf32, #tpu.memory_space<vmem>>, vector<9x8xf32>
    %c0_4 = arith.constant 0 : index
    %c0_5 = arith.constant 0 : index
    %3 = vector.load %arg3[%c0_4, %c0_5] : memref<9x1xf32, #tpu.memory_space<vmem>>, vector<9x1xf32>
    %c0_6 = arith.constant 0 : index
    %c0_7 = arith.constant 0 : index
    %4 = vector.load %arg4[%c0_6, %c0_7] : memref<9x256xf32, #tpu.memory_space<vmem>>, vector<9x256xf32>
    %c0_8 = arith.constant 0 : index
    %c0_9 = arith.constant 0 : index
    %c0_10 = arith.constant 0 : index
    %5 = vector.load %arg5[%c0_8, %c0_9, %c0_10] : memref<1x8x9xf32, #tpu.memory_space<vmem>>, vector<1x8x9xf32>
    %6 = vector.shape_cast %5 : vector<1x8x9xf32> to vector<8x9xf32>
    %cst = arith.constant dense<0.000000e+00> : vector<9x256xf32>
    %7 = tpu.matmul %2, %1, %cst {dimension_numbers = #tpu.dot_dimension_numbers<[1], [0], [0], [1], [0, 0, 1, 1], [], []>} : vector<9x8xf32>, vector<8x256xf32>, vector<9x256xf32> -> vector<9x256xf32>
    %8 = vector.broadcast %3 : vector<9x1xf32> to vector<9x256xf32>
    %9 = arith.addf %7, %8 : vector<9x256xf32>
    %10 = arith.negf %9 : vector<9x256xf32>
    %11 = math.exp %10 : vector<9x256xf32>
    %cst_11 = arith.constant 1.000000e+00 : f32
    %12 = vector.broadcast %cst_11 : f32 to vector<9x256xf32>
    %13 = arith.addf %12, %11 : vector<9x256xf32>
    %14 = arith.divf %12, %13 : vector<9x256xf32>
    %15 = arith.mulf %14, %4 : vector<9x256xf32>
    %cst_12 = arith.constant 0.000000e+00 : f32
    %16 = vector.broadcast %cst_12 : f32 to vector<8x256xf32>
    %c17_i32 = arith.constant 17 : i32
    %17 = tpu.dynamic_rotate %1 by %c17_i32 dim 1 : vector<8x256xf32>, i32 -> vector<8x256xf32>
    %18 = vector.extract_strided_slice %15 {offsets = [0, 0], sizes = [1, 256], strides = [1, 1]} : vector<9x256xf32> to vector<1x256xf32>
    %19 = vector.broadcast %18 : vector<1x256xf32> to vector<8x256xf32>
    %20 = arith.mulf %17, %19 : vector<8x256xf32>
    %21 = vector.extract_strided_slice %6 {offsets = [0, 0], sizes = [8, 1], strides = [1, 1]} : vector<8x9xf32> to vector<8x1xf32>
    %22 = vector.broadcast %21 : vector<8x1xf32> to vector<8x256xf32>
    %23 = arith.mulf %20, %22 : vector<8x256xf32>
    %24 = arith.addf %16, %23 : vector<8x256xf32>
    %c16_i32 = arith.constant 16 : i32
    %25 = tpu.dynamic_rotate %1 by %c16_i32 dim 1 : vector<8x256xf32>, i32 -> vector<8x256xf32>
    %26 = vector.extract_strided_slice %15 {offsets = [1, 0], sizes = [1, 256], strides = [1, 1]} : vector<9x256xf32> to vector<1x256xf32>
    %27 = vector.broadcast %26 : vector<1x256xf32> to vector<8x256xf32>
    %28 = arith.mulf %25, %27 : vector<8x256xf32>
    %29 = vector.extract_strided_slice %6 {offsets = [0, 1], sizes = [8, 1], strides = [1, 1]} : vector<8x9xf32> to vector<8x1xf32>
    %30 = vector.broadcast %29 : vector<8x1xf32> to vector<8x256xf32>
    %31 = arith.mulf %28, %30 : vector<8x256xf32>
    %32 = arith.addf %24, %31 : vector<8x256xf32>
    %c15_i32 = arith.constant 15 : i32
    %33 = tpu.dynamic_rotate %1 by %c15_i32 dim 1 : vector<8x256xf32>, i32 -> vector<8x256xf32>
    %34 = vector.extract_strided_slice %15 {offsets = [2, 0], sizes = [1, 256], strides = [1, 1]} : vector<9x256xf32> to vector<1x256xf32>
    %35 = vector.broadcast %34 : vector<1x256xf32> to vector<8x256xf32>
    %36 = arith.mulf %33, %35 : vector<8x256xf32>
    %37 = vector.extract_strided_slice %6 {offsets = [0, 2], sizes = [8, 1], strides = [1, 1]} : vector<8x9xf32> to vector<8x1xf32>
    %38 = vector.broadcast %37 : vector<8x1xf32> to vector<8x256xf32>
    %39 = arith.mulf %36, %38 : vector<8x256xf32>
    %40 = arith.addf %32, %39 : vector<8x256xf32>
    %c1_i32 = arith.constant 1 : i32
    %41 = tpu.dynamic_rotate %1 by %c1_i32 dim 1 : vector<8x256xf32>, i32 -> vector<8x256xf32>
    %42 = vector.extract_strided_slice %15 {offsets = [3, 0], sizes = [1, 256], strides = [1, 1]} : vector<9x256xf32> to vector<1x256xf32>
    %43 = vector.broadcast %42 : vector<1x256xf32> to vector<8x256xf32>
    %44 = arith.mulf %41, %43 : vector<8x256xf32>
    %45 = vector.extract_strided_slice %6 {offsets = [0, 3], sizes = [8, 1], strides = [1, 1]} : vector<8x9xf32> to vector<8x1xf32>
    %46 = vector.broadcast %45 : vector<8x1xf32> to vector<8x256xf32>
    %47 = arith.mulf %44, %46 : vector<8x256xf32>
    %48 = arith.addf %40, %47 : vector<8x256xf32>
    %49 = vector.extract_strided_slice %15 {offsets = [4, 0], sizes = [1, 256], strides = [1, 1]} : vector<9x256xf32> to vector<1x256xf32>
    %50 = vector.broadcast %49 : vector<1x256xf32> to vector<8x256xf32>
    %51 = arith.mulf %1, %50 : vector<8x256xf32>
    %52 = vector.extract_strided_slice %6 {offsets = [0, 4], sizes = [8, 1], strides = [1, 1]} : vector<8x9xf32> to vector<8x1xf32>
    %53 = vector.broadcast %52 : vector<8x1xf32> to vector<8x256xf32>
    %54 = arith.mulf %51, %53 : vector<8x256xf32>
    %55 = arith.addf %48, %54 : vector<8x256xf32>
    %c255_i32 = arith.constant 255 : i32
    %56 = tpu.dynamic_rotate %1 by %c255_i32 dim 1 : vector<8x256xf32>, i32 -> vector<8x256xf32>
    %57 = vector.extract_strided_slice %15 {offsets = [5, 0], sizes = [1, 256], strides = [1, 1]} : vector<9x256xf32> to vector<1x256xf32>
    %58 = vector.broadcast %57 : vector<1x256xf32> to vector<8x256xf32>
    %59 = arith.mulf %56, %58 : vector<8x256xf32>
    %60 = vector.extract_strided_slice %6 {offsets = [0, 5], sizes = [8, 1], strides = [1, 1]} : vector<8x9xf32> to vector<8x1xf32>
    %61 = vector.broadcast %60 : vector<8x1xf32> to vector<8x256xf32>
    %62 = arith.mulf %59, %61 : vector<8x256xf32>
    %63 = arith.addf %55, %62 : vector<8x256xf32>
    %c241_i32 = arith.constant 241 : i32
    %64 = tpu.dynamic_rotate %1 by %c241_i32 dim 1 : vector<8x256xf32>, i32 -> vector<8x256xf32>
    %65 = vector.extract_strided_slice %15 {offsets = [6, 0], sizes = [1, 256], strides = [1, 1]} : vector<9x256xf32> to vector<1x256xf32>
    %66 = vector.broadcast %65 : vector<1x256xf32> to vector<8x256xf32>
    %67 = arith.mulf %64, %66 : vector<8x256xf32>
    %68 = vector.extract_strided_slice %6 {offsets = [0, 6], sizes = [8, 1], strides = [1, 1]} : vector<8x9xf32> to vector<8x1xf32>
    %69 = vector.broadcast %68 : vector<8x1xf32> to vector<8x256xf32>
    %70 = arith.mulf %67, %69 : vector<8x256xf32>
    %71 = arith.addf %63, %70 : vector<8x256xf32>
    %c240_i32 = arith.constant 240 : i32
    %72 = tpu.dynamic_rotate %1 by %c240_i32 dim 1 : vector<8x256xf32>, i32 -> vector<8x256xf32>
    %73 = vector.extract_strided_slice %15 {offsets = [7, 0], sizes = [1, 256], strides = [1, 1]} : vector<9x256xf32> to vector<1x256xf32>
    %74 = vector.broadcast %73 : vector<1x256xf32> to vector<8x256xf32>
    %75 = arith.mulf %72, %74 : vector<8x256xf32>
    %76 = vector.extract_strided_slice %6 {offsets = [0, 7], sizes = [8, 1], strides = [1, 1]} : vector<8x9xf32> to vector<8x1xf32>
    %77 = vector.broadcast %76 : vector<8x1xf32> to vector<8x256xf32>
    %78 = arith.mulf %75, %77 : vector<8x256xf32>
    %79 = arith.addf %71, %78 : vector<8x256xf32>
    %c239_i32 = arith.constant 239 : i32
    %80 = tpu.dynamic_rotate %1 by %c239_i32 dim 1 : vector<8x256xf32>, i32 -> vector<8x256xf32>
    %81 = vector.extract_strided_slice %15 {offsets = [8, 0], sizes = [1, 256], strides = [1, 1]} : vector<9x256xf32> to vector<1x256xf32>
    %82 = vector.broadcast %81 : vector<1x256xf32> to vector<8x256xf32>
    %83 = arith.mulf %80, %82 : vector<8x256xf32>
    %84 = vector.extract_strided_slice %6 {offsets = [0, 8], sizes = [8, 1], strides = [1, 1]} : vector<8x9xf32> to vector<8x1xf32>
    %85 = vector.broadcast %84 : vector<8x1xf32> to vector<8x256xf32>
    %86 = arith.mulf %83, %85 : vector<8x256xf32>
    %87 = arith.addf %79, %86 : vector<8x256xf32>
    %c0_13 = arith.constant 0 : index
    %c0_14 = arith.constant 0 : index
    %c0_15 = arith.constant 0 : index
    %88 = vector.load %arg6[%c0_13, %c0_14, %c0_15] : memref<1x8x256xf32, #tpu.memory_space<vmem>>, vector<1x8x256xf32>
    %89 = vector.shape_cast %88 : vector<1x8x256xf32> to vector<8x256xf32>
    %90 = arith.addf %87, %89 : vector<8x256xf32>
    %c0_16 = arith.constant 0 : index
    %c0_17 = arith.constant 0 : index
    %c0_18 = arith.constant 0 : index
    %91 = vector.load %arg7[%c0_16, %c0_17, %c0_18] : memref<1x8x256xf32, #tpu.memory_space<vmem>>, vector<1x8x256xf32>
    %92 = vector.shape_cast %91 : vector<1x8x256xf32> to vector<8x256xf32>
    %93 = vector.shape_cast %90 : vector<8x256xf32> to vector<1x8x256xf32>
    tpu.vector_store %arg7[%c0_16, %c0_17, %c0_18], %93 {strides = array<i32>} : memref<1x8x256xf32, #tpu.memory_space<vmem>>, vector<1x8x256xf32>,
    return
  }
  func.func @transform_0(%arg0: i32) -> (i32, i32, i32) {
    %c0_i32 = arith.constant 0 : i32
    %c0_i32_0 = arith.constant 0 : i32
    %c0_i32_1 = arith.constant 0 : i32
    return %arg0, %c0_i32, %c0_i32_0 : i32, i32, i32
  }
  func.func @transform_1(%arg0: i32) -> (i32, i32) {
    %c0_i32 = arith.constant 0 : i32
    %c0_i32_0 = arith.constant 0 : i32
    %c0_i32_1 = arith.constant 0 : i32
    return %c0_i32, %c0_i32_0 : i32, i32
  }
  func.func @transform_2(%arg0: i32) -> (i32, i32) {
    %c0_i32 = arith.constant 0 : i32
    %c0_i32_0 = arith.constant 0 : i32
    %c0_i32_1 = arith.constant 0 : i32
    return %c0_i32, %c0_i32_0 : i32, i32
  }
  func.func @transform_3(%arg0: i32) -> (i32, i32) {
    %c0_i32 = arith.constant 0 : i32
    %c0_i32_0 = arith.constant 0 : i32
    %c0_i32_1 = arith.constant 0 : i32
    return %c0_i32, %c0_i32_0 : i32, i32
  }
  func.func @transform_4(%arg0: i32) -> (i32, i32, i32) {
    %c0_i32 = arith.constant 0 : i32
    %c0_i32_0 = arith.constant 0 : i32
    %c0_i32_1 = arith.constant 0 : i32
    return %arg0, %c0_i32, %c0_i32_0 : i32, i32, i32
  }
  func.func @transform_5(%arg0: i32) -> (i32, i32, i32) {
    %c0_i32 = arith.constant 0 : i32
    %c0_i32_0 = arith.constant 0 : i32
    %c0_i32_1 = arith.constant 0 : i32
    return %arg0, %c0_i32, %c0_i32_0 : i32, i32, i32
  }
  func.func @transform_6(%arg0: i32) -> (i32, i32, i32) {
    %c0_i32 = arith.constant 0 : i32
    %c0_i32_0 = arith.constant 0 : i32
    %c0_i32_1 = arith.constant 0 : i32
    return %arg0, %c0_i32, %c0_i32_0 : i32, i32, i32
  }
}

</mosaic_0001>

<llo_original>
// kernel: res_block.2
$region0: #{res_block.2}
  #allocation0 [shape = 'u32[]', space=smem, size = 0x4, offset = 0x4, fixed_abs, tag = 'smem constant byte address 0x4 - core index']
  #allocation1 [shape = 'u32[144,128]{1,0:T(1,128)}', space=vmem, size = 0x12000, scoped, tag = 'internal scratch']
  %s0 = inlined_call_operand.vmem [shape: f32[2,8,256], index: 0, kind: input, shape index: {}]
  %s1 = inlined_call_operand.vmem [shape: f32[9,8], index: 1, kind: input, shape index: {}]
  %s2 = inlined_call_operand.vmem [shape: f32[9,1], index: 2, kind: input, shape index: {}]
  %s3 = inlined_call_operand.vmem [shape: f32[9,256], index: 3, kind: input, shape index: {}]
  %s4 = inlined_call_operand.vmem [shape: f32[2,8,9], index: 4, kind: input, shape index: {}]
  %s5 = inlined_call_operand.vmem [shape: f32[2,8,256], index: 5, kind: output, shape index: {}]
  %s6 = sld [smem:[#allocation0]]
  $region53: #{res_block.2} parent=0
    _
  %s8 = ssub.s32 1, %s6
  %s9 = scalar_select 0, %s8, %s6
  loop: start=0, step=1, limit=4
  $region2: #{res_block.2} parent=0 // loop_pre_header
    _
  $region3: #{res_block.2} parent=0 // loop_header
    %s11 = sphi 0, %s15
    %p12 = scmp.ge.s32.totalorder %s11, 4
    %s21 = sphi 0, %s23
    %s24 = sphi 0, %s21
    %s25 = sphi 0, %s24
    %s41 = sphi 0, %s25
    %s45 = sphi 0, %s45
    %s47 = sphi 0, %s45
    %s48 = sphi 0, %s47
    %s62 = sphi 0, %s48
    %s66 = sphi 0, %s66
    %s68 = sphi 0, %s66
    %s69 = sphi 0, %s68
    %s83 = sphi 0, %s69
    %s87 = sphi 0, %s87
    %s89 = sphi 0, %s87
    %s90 = sphi 0, %s89
    %s104 = sphi 0, %s90
    %s110 = sphi 0, %s112
    %s113 = sphi 0, %s110
    %s114 = sphi 0, %s113
    %s130 = sphi 0, %s114
    %s136 = sphi 0, %s138
    %s139 = sphi 0, %s136
    %s140 = sphi 0, %s139
    %s156 = sphi 0, %s140
  $region4: #{res_block.2} parent=0 // loop_header_branch
    %14 = sbr.rel (%p12) target = $region8
  $region5: #{res_block.2} parent=0 // loop_body
    %s16 = ssub.s32 %s11, 1
    %s17 = ssub.s32 %s11, 2
    %s18 = sadd.s32 %s11, 1
    %s19 = ssub.s32 %s11, %s18
    %p20 = scmp.eq.s32.totalorder %s19, 0
    %s22 = sadd.s32 %s21, 1
    %s23 = scalar_select %p20, %s21, %s22
    %p26 = pneg %p20
    %p27 = scmp.eq.s32.totalorder %s11, 1
    %p28 = por %p26, %p27
    %p29 = scmp.ne.s32.totalorder %s21, %s24
    %p30 = scmp.eq.s32.totalorder %s11, 0
    %p31 = por %p29, %p30
    %p32 = scmp.ne.s32.totalorder %s21, %s24
    %p33 = scmp.eq.s32.totalorder %s16, 1
    %p34 = por %p32, %p33
    %p35 = scmp.ne.s32.totalorder %s24, %s25
    %p36 = scmp.eq.s32.totalorder %s16, 0
    %p37 = por %p35, %p36
    %p38 = scmp.ne.s32.totalorder %s24, %s25
    %p39 = scmp.eq.s32.totalorder %s17, 1
    %p40 = por %p38, %p39
    %p42 = scmp.ne.s32.totalorder %s25, %s41
    %p43 = scmp.eq.s32.totalorder %s17, 0
    %p44 = por %p42, %p43
    %s46 = sadd.s32 %s45, 1
    %p49 = scmp.eq.s32.totalorder %s11, 1
    %p50 = scmp.ne.s32.totalorder %s45, %s47
    %p51 = scmp.eq.s32.totalorder %s11, 0
    %p52 = por %p50, %p51
    %p53 = scmp.ne.s32.totalorder %s45, %s47
    %p54 = scmp.eq.s32.totalorder %s16, 1
    %p55 = por %p53, %p54
    %p56 = scmp.ne.s32.totalorder %s47, %s48
    %p57 = scmp.eq.s32.totalorder %s16, 0
    %p58 = por %p56, %p57
    %p59 = scmp.ne.s32.totalorder %s47, %s48
    %p60 = scmp.eq.s32.totalorder %s17, 1
    %p61 = por %p59, %p60
    %p63 = scmp.ne.s32.totalorder %s48, %s62
    %p64 = scmp.eq.s32.totalorder %s17, 0
    %p65 = por %p63, %p64
    %s67 = sadd.s32 %s66, 1
    %p70 = scmp.eq.s32.totalorder %s11, 1
    %p71 = scmp.ne.s32.totalorder %s66, %s68
    %p72 = scmp.eq.s32.totalorder %s11, 0
    %p73 = por %p71, %p72
    %p74 = scmp.ne.s32.totalorder %s66, %s68
    %p75 = scmp.eq.s32.totalorder %s16, 1
    %p76 = por %p74, %p75
    %p77 = scmp.ne.s32.totalorder %s68, %s69
    %p78 = scmp.eq.s32.totalorder %s16, 0
    %p79 = por %p77, %p78
    %p80 = scmp.ne.s32.totalorder %s68, %s69
    %p81 = scmp.eq.s32.totalorder %s17, 1
    %p82 = por %p80, %p81
    %p84 = scmp.ne.s32.totalorder %s69, %s83
    %p85 = scmp.eq.s32.totalorder %s17, 0
    %p86 = por %p84, %p85
    %s88 = sadd.s32 %s87, 1
    %p91 = scmp.eq.s32.totalorder %s11, 1
    %p92 = scmp.ne.s32.totalorder %s87, %s89
    %p93 = scmp.eq.s32.totalorder %s11, 0
    %p94 = por %p92, %p93
    %p95 = scmp.ne.s32.totalorder %s87, %s89
    %p96 = scmp.eq.s32.totalorder %s16, 1
    %p97 = por %p95, %p96
    %p98 = scmp.ne.s32.totalorder %s89, %s90
    %p99 = scmp.eq.s32.totalorder %s16, 0
    %p100 = por %p98, %p99
    %p101 = scmp.ne.s32.totalorder %s89, %s90
    %p102 = scmp.eq.s32.totalorder %s17, 1
    %p103 = por %p101, %p102
    %p105 = scmp.ne.s32.totalorder %s90, %s104
    %p106 = scmp.eq.s32.totalorder %s17, 0
    %p107 = por %p105, %p106
    %s108 = ssub.s32 %s11, %s18
    %p109 = scmp.eq.s32.totalorder %s108, 0
    %s111 = sadd.s32 %s110, 1
    %s112 = scalar_select %p109, %s110, %s111
    %p115 = pneg %p109
    %p116 = scmp.eq.s32.totalorder %s11, 1
    %p117 = por %p115, %p116
    %p118 = scmp.ne.s32.totalorder %s110, %s113
    %p119 = scmp.eq.s32.totalorder %s11, 0
    %p120 = por %p118, %p119
    %p121 = scmp.ne.s32.totalorder %s110, %s113
    %p122 = scmp.eq.s32.totalorder %s16, 1
    %p123 = por %p121, %p122
    %p124 = scmp.ne.s32.totalorder %s113, %s114
    %p125 = scmp.eq.s32.totalorder %s16, 0
    %p126 = por %p124, %p125
    %p127 = scmp.ne.s32.totalorder %s113, %s114
    %p128 = scmp.eq.s32.totalorder %s17, 1
    %p129 = por %p127, %p128
    %p131 = scmp.ne.s32.totalorder %s114, %s130
    %p132 = scmp.eq.s32.totalorder %s17, 0
    %p133 = por %p131, %p132
    %s134 = ssub.s32 %s11, %s18
    %p135 = scmp.eq.s32.totalorder %s134, 0
    %s137 = sadd.s32 %s136, 1
    %s138 = scalar_select %p135, %s136, %s137
    %p141 = pneg %p135
    %p142 = scmp.eq.s32.totalorder %s11, 1
    %p143 = por %p141, %p142
    %p144 = scmp.ne.s32.totalorder %s136, %s139
    %p145 = scmp.eq.s32.totalorder %s11, 0
    %p146 = por %p144, %p145
    %p147 = scmp.ne.s32.totalorder %s136, %s139
    %p148 = scmp.eq.s32.totalorder %s16, 1
    %p149 = por %p147, %p148
    %p150 = scmp.ne.s32.totalorder %s139, %s140
    %p151 = scmp.eq.s32.totalorder %s16, 0
    %p152 = por %p150, %p151
    %p153 = scmp.ne.s32.totalorder %s139, %s140
    %p154 = scmp.eq.s32.totalorder %s17, 1
    %p155 = por %p153, %p154
    %p157 = scmp.ne.s32.totalorder %s140, %s156
    %p158 = scmp.eq.s32.totalorder %s17, 0
    %p159 = por %p157, %p158
    %p160 = scmp.le.s32.totalorder 1, %s11
    %p161 = scmp.lt.s32.totalorder %s11, 3
    %p162 = pnand %p160, %p161
    %p163 = pneg %p162
    // Predicated region
    $region9: #{res_block.2} parent=5 // pred_check
      _
    $region10: #{res_block.2} parent=5 // pred_check_branch
      %165 = sbr.rel (%p162) target = $region12
    $region11: #{res_block.2} parent=5 // pred_region
      %s166 = ssub.s32 %s11, 1
      // Predicated region
      $region13: #{res_block.2} parent=11 // pred_check
        %p167 = pneg %p58
      $region14: #{res_block.2} parent=11 // pred_check_branch
        %169 = sbr.rel (%p167) target = $region16
      $region15: #{res_block.2} parent=11 // pred_region
        _
      $region16: #{res_block.2} parent=11 // pred_fallthru
        _
      // Predicated region
      $region17: #{res_block.2} parent=11 // pred_check
        %p170 = pneg %p79
      $region18: #{res_block.2} parent=11 // pred_check_branch
        %172 = sbr.rel (%p170) target = $region20
      $region19: #{res_block.2} parent=11 // pred_region
        _
      $region20: #{res_block.2} parent=11 // pred_fallthru
        _
      // Predicated region
      $region21: #{res_block.2} parent=11 // pred_check
        %p173 = pneg %p100
      $region22: #{res_block.2} parent=11 // pred_check_branch
        %175 = sbr.rel (%p173) target = $region24
      $region23: #{res_block.2} parent=11 // pred_region
        _
      $region24: #{res_block.2} parent=11 // pred_fallthru
        _
    $region12: #{res_block.2} parent=5 // pred_fallthru
      _
    %p176 = scmp.lt.s32.totalorder %s11, 2
    // Predicated region
    $region25: #{res_block.2} parent=5 // pred_check
      %p177 = pneg %p176
    $region26: #{res_block.2} parent=5 // pred_check_branch
      %179 = sbr.rel (%p177) target = $region28
    $region27: #{res_block.2} parent=5 // pred_region
      // Predicated region
      $region29: #{res_block.2} parent=27 // pred_check
        %p180 = pneg %p31
      $region30: #{res_block.2} parent=27 // pred_check_branch
        %182 = sbr.rel (%p180) target = $region32
      $region31: #{res_block.2} parent=27 // pred_region
        %p183 = scmp.lt.s32.totalorder %s11, 1
        %s184 = scalar_select %p183, %s11, 1
        %s185 = smul.addr %s184, 2
        %s186 = smul.addr %s185, 8
        %s187 = scalar_lea.vmem %s0, %s186
      $region32: #{res_block.2} parent=27 // pred_fallthru
        _
      // Predicated region
      $region33: #{res_block.2} parent=27 // pred_check
        %p188 = pneg %p120
      $region34: #{res_block.2} parent=27 // pred_check_branch
        %190 = sbr.rel (%p188) target = $region36
      $region35: #{res_block.2} parent=27 // pred_region
        %p191 = scmp.lt.s32.totalorder %s11, 1
        %s192 = scalar_select %p191, %s11, 1
        %s193 = smul.addr %s192, 8
        %s194 = scalar_lea.vmem %s4, %s193
      $region36: #{res_block.2} parent=27 // pred_fallthru
        _
    $region28: #{res_block.2} parent=5 // pred_fallthru
      _
    %p195 = scmp.le.s32.totalorder 1, %s11
    %p196 = scmp.lt.s32.totalorder %s11, 3
    %p197 = pnand %p195, %p196
    %p198 = pneg %p197
    // Predicated region
    $region37: #{res_block.2} parent=5 // pred_check
      _
    $region38: #{res_block.2} parent=5 // pred_check_branch
      %200 = sbr.rel (%p197) target = $region40
    $region39: #{res_block.2} parent=5 // pred_region
      %s201 = ssub.s32 %s11, 1
      %p202 = scmp.lt.s32.totalorder %s16, 1
      %s203 = scalar_select %p202, %s16, 1
      %s204 = smul.addr %s203, 2
      %s205 = smul.addr %s204, 8
      %s206 = scalar_lea.vmem %s0, %s205
      %p207 = pneg %p37
      %p208 = pneg %p34
      %p209 = pneg %p58
      %p210 = pneg %p55
      %p211 = pneg %p79
      %p212 = pneg %p76
      %p213 = pneg %p100
      %p214 = pneg %p97
      %p215 = scmp.lt.s32.totalorder %s16, 1
      %s216 = scalar_select %p215, %s16, 1
      %s217 = smul.addr %s216, 8
      %s218 = scalar_lea.vmem %s4, %s217
      %p219 = pneg %p126
      %p220 = pneg %p123
      %p221 = pneg %p152
      %p222 = pneg %p149
      %p223 = scmp.lt.s32.totalorder %s16, 1
      %s224 = scalar_select %p223, %s16, 1
      %s225 = smul.addr %s224, 2
      %s226 = smul.addr %s225, 8
      %s227 = scalar_lea.vmem %s5, %s226
      %p228 = scmp.lt.s32.totalorder %s16, 1
      %s229 = scalar_select %p228, %s16, 1
      %s230 = smul.addr %s229, 2
      %s231 = smul.addr %s230, 8
      %s232 = scalar_lea.vmem %s0, %s231
      %p233 = scmp.lt.s32.totalorder %s16, 1
      %s234 = scalar_select %p233, %s16, 1
      %s235 = smul.addr %s234, 8
      %s236 = scalar_lea.vmem %s4, %s235
      %p237 = scmp.lt.s32.totalorder %s16, 1
      %s238 = scalar_select %p237, %s16, 1
      %s239 = smul.addr %s238, 2
      %s240 = smul.addr %s239, 8
      %s241 = scalar_lea.vmem %s5, %s240
      %v242 = vld [vmem:[%s232] sm:$0xff]
      %v243 = vld [vmem:[%s232 + $0x8] sm:$0xff]
      %v244 = vld [vmem:[%s1] sm:$0xff]
      %v245 = vld [vmem:[%s1 + $0x8] sm:$0x1]
      %v246 = vld [vmem:[%s2] sm:$0xff]
      %v247 = vld [vmem:[%s2 + $0x8] sm:$0x1]
      %v248 = vld [vmem:[%s3] sm:$0xff]
      %v249 = vld [vmem:[%s3 + $0x8] sm:$0xff]
      %v250 = vld [vmem:[%s3 + $0x10] sm:$0x1]
      %v251 = vld [vmem:[%s3 + $0x18] sm:$0x1]
      %v252 = vld [vmem:[%s236] sm:$0xff]
      %254 = vset.pattern.permute.xlu0 0
      %255 = vperm.xlu0 %254, %v246
      %v256 = vpop.permute.xlu0 %255
      %259 = vset.pattern.permute.xlu0 0
      %260 = vperm.xlu0 %259, %v247
      %v261 = vpop.permute.xlu0 %260
      %vm263 = vcmask 64512
      %v265 = vsel %vm263, %v244, 0
      %v268 = vsel %vm263, %v245, 0
      %270 = vmatprep.subr.mxu0 %v243
      %271 = vmatpush1.msra.mxu0 %v242
      %272 = vmatprep.subr.mxu0 0.0
      %273 = vmatpush1.msra.mxu0 0.0
      %274 = vmatprep.subr.mxu0 0.0
      %275 = vmatpush1.msra.mxu0 0.0
      %276 = vmatprep.subr.mxu0 0.0
      %277 = vmatpush1.msra.mxu0 0.0
      %278 = vmatprep.subr.mxu0 0.0
      %279 = vmatpush1.msra.mxu0 0.0
      %280 = vmatprep.subr.mxu0 0.0
      %281 = vmatpush1.msra.mxu0 0.0
      %282 = vmatprep.subr.mxu0 0.0
      %283 = vmatpush1.msra.mxu0 0.0
      %284 = vmatprep.subr.mxu0 0.0
      %285 = vmatpush1.msra.mxu0 0.0
      %286 = vmatprep.subr.mxu0 0.0
      %287 = vmatpush1.msra.mxu0 0.0
      %288 = vmatprep.subr.mxu0 0.0
      %289 = vmatpush1.msra.mxu0 0.0
      %290 = vmatprep.subr.mxu0 0.0
      %291 = vmatpush1.msra.mxu0 0.0
      %292 = vmatprep.subr.mxu0 0.0
      %293 = vmatpush1.msra.mxu0 0.0
      %294 = vmatprep.subr.mxu0 0.0
      %295 = vmatpush1.msra.mxu0 0.0
      %296 = vmatprep.subr.mxu0 0.0
      %297 = vmatpush1.msra.mxu0 0.0
      %298 = vmatprep.subr.mxu0 0.0
      %299 = vmatpush1.msra.mxu0 0.0
      %300 = vmatprep.subr.mxu0 0.0
      %301 = vmatpush1.msra.mxu0 0.0
      %302 = vmatprep.subr.mxu0 0.0
      %303 = vmatpush1.msra.mxu0 0.0
      %304 = vmatprep.subr.mxu0 0.0
      %305 = vmatpush1.msra.mxu0 0.0
      %306 = vmatprep.subr.mxu0 0.0
      %307 = vmatpush1.msra.mxu0 0.0
      %308 = vmatprep.subr.mxu0 0.0
      %309 = vmatpush1.msra.mxu0 0.0
      %310 = vmatprep.subr.mxu0 0.0
      %311 = vmatpush1.msra.mxu0 0.0
      %312 = vmatprep.subr.mxu0 0.0
      %313 = vmatpush1.msra.mxu0 0.0
      %314 = vmatprep.subr.mxu0 0.0
      %315 = vmatpush1.msra.mxu0 0.0
      %316 = vmatprep.subr.mxu0 0.0
      %317 = vmatpush1.msra.mxu0 0.0
      %318 = vmatprep.subr.mxu0 0.0
      %319 = vmatpush1.msra.mxu0 0.0
      %320 = vmatprep.subr.mxu0 0.0
      %321 = vmatpush1.msra.mxu0 0.0
      %322 = vmatprep.subr.mxu0 0.0
      %323 = vmatpush1.msra.mxu0 0.0
      %324 = vmatprep.subr.mxu0 0.0
      %325 = vmatpush1.msra.mxu0 0.0
      %326 = vmatprep.subr.mxu0 0.0
      %327 = vmatpush1.msra.mxu0 0.0
      %328 = vmatprep.subr.mxu0 0.0
      %329 = vmatpush1.msra.mxu0 0.0
      %330 = vmatprep.subr.mxu0 0.0
      %331 = vmatpush1.msra.mxu0 0.0
      %332 = vmatprep.subr.mxu0 0.0
      %333 = vmatpush1.msra.mxu0 0.0
      %334 = vmatprep.mubr.f32.mxu0 0.0
      %335 = vmatmul.mubr.f32.gmra.mrb[0].mxu0 %v265
      %v336 = vpop.f32.mrb[0].mxu0
      %v337 = vadd.f32 %v256, %v336
      %v338 = vpop.f32.mrb[0].mxu0
      %v339 = vadd.f32 %v256, %v338
      %340 = vmatprep.mubr.f32.mxu0 0.0
      %341 = vmatmul.mubr.f32.gmra.mrb[0].mxu0 %v268
      %v342 = vpop.f32.mrb[0].mxu0
      %v343 = vadd.f32 %v261, %v342
      %v344 = vpop.f32.mrb[0].mxu0
      %v345 = vadd.f32 %v261, %v344
      %346 = vdwg.mxu0
      %v347 = vxor.u32 %v337, 2147483648
      %v348 = vxor.u32 %v339, 2147483648
      %v349 = vxor.u32 %v343, 2147483648
      %v350 = vxor.u32 %v345, 2147483648
      %v351 = vmul.f32 %v347, 1.442695
      %v352 = vpow.pop %v351
      %v353 = vmul.f32 %v348, 1.442695
      %v354 = vpow.pop %v353
      %v355 = vmul.f32 %v349, 1.442695
      %v356 = vpow.pop %v355
      %v357 = vmul.f32 %v350, 1.442695
      %v358 = vpow.pop %v357
      %v359 = vadd.f32 %v352, 1.0
      %v360 = vadd.f32 %v354, 1.0
      %v361 = vadd.f32 %v356, 1.0
      %v362 = vadd.f32 %v358, 1.0
      %v363 = vrcp.pop %v359
      %v364 = vmul.f32 1.0, %v363
      %v365 = vrcp.pop %v360
      %v366 = vmul.f32 1.0, %v365
      %v367 = vrcp.pop %v361
      %v368 = vmul.f32 1.0, %v367
      %v369 = vrcp.pop %v362
      %v370 = vmul.f32 1.0, %v369
      %v371 = vmul.f32 %v364, %v248
      %v372 = vmul.f32 %v366, %v249
      %v373 = vmul.f32 %v368, %v250
      %v374 = vmul.f32 %v370, %v251
      %375 = vrot.lane.b32.xlu0 %v242, 17
      %v376 = vpop.permute.xlu0 %375
      %377 = vrot.lane.b32.xlu0 %v243, 17
      %v378 = vpop.permute.xlu0 %377
      %v379 = vlaneseq
      %v380 = vand.u32 %v379, 127
      %vm381 = vcmp.lt.s32.totalorder %v380, 17
      %v382 = vsel %vm381, %v376, %v378
      %v383 = vsel %vm381, %v378, %v376
      %v384 = vlaneseq
      %v385 = vshrl.u32 %v384, 7
      %v386 = vsub.s32 0, %v385
      %v387 = vrot.slane %v371, %v386
      %v388 = vlaneseq
      %v389 = vshrl.u32 %v388, 7
      %v390 = vsub.s32 0, %v389
      %v391 = vrot.slane %v372, %v390
      %v392 = vmul.f32 %v383, %v387
      %v393 = vmul.f32 %v382, %v391
      %395 = vset.pattern.permute.xlu0 0
      %396 = vperm.xlu0 %395, %v252
      %v397 = vpop.permute.xlu0 %396
      %v399 = vmul.f32 %v392, %v397
      %v400 = vmul.f32 %v393, %v397
      %v401 = vadd.f32 %v399, 0.0
      %v402 = vadd.f32 %v400, 0.0
      %403 = vrot.lane.b32.xlu0 %v242, 16
      %v404 = vpop.permute.xlu0 %403
      %405 = vrot.lane.b32.xlu0 %v243, 16
      %v406 = vpop.permute.xlu0 %405
      %vm407 = vcmp.lt.s32.totalorder %v380, 16
      %v408 = vsel %vm407, %v404, %v406
      %v409 = vsel %vm407, %v406, %v404
      %v410 = vlaneseq
      %v411 = vshrl.u32 %v410, 7
      %v412 = vsub.s32 1, %v411
      %v413 = vrot.slane %v371, %v412
      %v414 = vlaneseq
      %v415 = vshrl.u32 %v414, 7
      %v416 = vsub.s32 1, %v415
      %v417 = vrot.slane %v372, %v416
      %v418 = vmul.f32 %v409, %v413
      %v419 = vmul.f32 %v408, %v417
      %420 = vset.pattern.permute.xlu0 1
      %421 = vperm.xlu0 %420, %v252
      %v422 = vpop.permute.xlu0 %421
      %v424 = vmul.f32 %v418, %v422
      %v425 = vmul.f32 %v419, %v422
      %v426 = vadd.f32 %v401, %v424
      %v427 = vadd.f32 %v402, %v425
      %428 = vrot.lane.b32.xlu0 %v242, 15
      %v429 = vpop.permute.xlu0 %428
      %430 = vrot.lane.b32.xlu0 %v243, 15
      %v431 = vpop.permute.xlu0 %430
      %vm432 = vcmp.lt.s32.totalorder %v380, 15
      %v433 = vsel %vm432, %v429, %v431
      %v434 = vsel %vm432, %v431, %v429
      %v435 = vlaneseq
      %v436 = vshrl.u32 %v435, 7
      %v437 = vsub.s32 2, %v436
      %v438 = vrot.slane %v371, %v437
      %v439 = vlaneseq
      %v440 = vshrl.u32 %v439, 7
      %v441 = vsub.s32 2, %v440
      %v442 = vrot.slane %v372, %v441
      %v443 = vmul.f32 %v434, %v438
      %v444 = vmul.f32 %v433, %v442
      %445 = vset.pattern.permute.xlu0 2
      %446 = vperm.xlu0 %445, %v252
      %v447 = vpop.permute.xlu0 %446
      %v449 = vmul.f32 %v443, %v447
      %v450 = vmul.f32 %v444, %v447
      %v451 = vadd.f32 %v426, %v449
      %v452 = vadd.f32 %v427, %v450
      %453 = vrot.lane.b32.xlu0 %v242, 1
      %v454 = vpop.permute.xlu0 %453
      %455 = vrot.lane.b32.xlu0 %v243, 1
      %v456 = vpop.permute.xlu0 %455
      %vm457 = vcmp.lt.s32.totalorder %v380, 1
      %v458 = vsel %vm457, %v454, %v456
      %v459 = vsel %vm457, %v456, %v454
      %v460 = vlaneseq
      %v461 = vshrl.u32 %v460, 7
      %v462 = vsub.s32 3, %v461
      %v463 = vrot.slane %v371, %v462
      %v464 = vlaneseq
      %v465 = vshrl.u32 %v464, 7
      %v466 = vsub.s32 3, %v465
      %v467 = vrot.slane %v372, %v466
      %v468 = vmul.f32 %v459, %v463
      %v469 = vmul.f32 %v458, %v467
      %470 = vset.pattern.permute.xlu0 3
      %471 = vperm.xlu0 %470, %v252
      %v472 = vpop.permute.xlu0 %471
      %v474 = vmul.f32 %v468, %v472
      %v475 = vmul.f32 %v469, %v472
      %v476 = vadd.f32 %v451, %v474
      %v477 = vadd.f32 %v452, %v475
      %v478 = vlaneseq
      %v479 = vshrl.u32 %v478, 7
      %v480 = vsub.s32 4, %v479
      %v481 = vrot.slane %v371, %v480
      %v482 = vlaneseq
      %v483 = vshrl.u32 %v482, 7
      %v484 = vsub.s32 4, %v483
      %v485 = vrot.slane %v372, %v484
      %v486 = vmul.f32 %v242, %v481
      %v487 = vmul.f32 %v243, %v485
      %488 = vset.pattern.permute.xlu0 4
      %489 = vperm.xlu0 %488, %v252
      %v490 = vpop.permute.xlu0 %489
      %v492 = vmul.f32 %v486, %v490
      %v493 = vmul.f32 %v487, %v490
      %v494 = vadd.f32 %v476, %v492
      %v495 = vadd.f32 %v477, %v493
      %496 = vrot.lane.b32.xlu0 %v242, 127
      %v497 = vpop.permute.xlu0 %496
      %498 = vrot.lane.b32.xlu0 %v243, 127
      %v499 = vpop.permute.xlu0 %498
      %vm500 = vcmp.lt.s32.totalorder %v380, 127
      %v501 = vsel %vm500, %v497, %v499
      %v502 = vsel %vm500, %v499, %v497
      %v503 = vlaneseq
      %v504 = vshrl.u32 %v503, 7
      %v505 = vsub.s32 5, %v504
      %v506 = vrot.slane %v371, %v505
      %v507 = vlaneseq
      %v508 = vshrl.u32 %v507, 7
      %v509 = vsub.s32 5, %v508
      %v510 = vrot.slane %v372, %v509
      %v511 = vmul.f32 %v501, %v506
      %v512 = vmul.f32 %v502, %v510
      %513 = vset.pattern.permute.xlu0 5
      %514 = vperm.xlu0 %513, %v252
      %v515 = vpop.permute.xlu0 %514
      %v517 = vmul.f32 %v511, %v515
      %v518 = vmul.f32 %v512, %v515
      %v519 = vadd.f32 %v494, %v517
      %v520 = vadd.f32 %v495, %v518
      %521 = vrot.lane.b32.xlu0 %v242, 113
      %v522 = vpop.permute.xlu0 %521
      %523 = vrot.lane.b32.xlu0 %v243, 113
      %v524 = vpop.permute.xlu0 %523
      %vm525 = vcmp.lt.s32.totalorder %v380, 113
      %v526 = vsel %vm525, %v522, %v524
      %v527 = vsel %vm525, %v524, %v522
      %v528 = vlaneseq
      %v529 = vshrl.u32 %v528, 7
      %v530 = vsub.s32 6, %v529
      %v531 = vrot.slane %v371, %v530
      %v532 = vlaneseq
      %v533 = vshrl.u32 %v532, 7
      %v534 = vsub.s32 6, %v533
      %v535 = vrot.slane %v372, %v534
      %v536 = vmul.f32 %v526, %v531
      %v537 = vmul.f32 %v527, %v535
      %538 = vset.pattern.permute.xlu0 6
      %539 = vperm.xlu0 %538, %v252
      %v540 = vpop.permute.xlu0 %539
      %v542 = vmul.f32 %v536, %v540
      %v543 = vmul.f32 %v537, %v540
      %v544 = vadd.f32 %v519, %v542
      %v545 = vadd.f32 %v520, %v543
      %546 = vrot.lane.b32.xlu0 %v242, 112
      %v547 = vpop.permute.xlu0 %546
      %548 = vrot.lane.b32.xlu0 %v243, 112
      %v549 = vpop.permute.xlu0 %548
      %vm550 = vcmp.lt.s32.totalorder %v380, 112
      %v551 = vsel %vm550, %v547, %v549
      %v552 = vsel %vm550, %v549, %v547
      %v553 = vlaneseq
      %v554 = vshrl.u32 %v553, 7
      %v555 = vsub.s32 7, %v554
      %v556 = vrot.slane %v371, %v555
      %v557 = vlaneseq
      %v558 = vshrl.u32 %v557, 7
      %v559 = vsub.s32 7, %v558
      %v560 = vrot.slane %v372, %v559
      %v561 = vmul.f32 %v551, %v556
      %v562 = vmul.f32 %v552, %v560
      %563 = vset.pattern.permute.xlu0 7
      %564 = vperm.xlu0 %563, %v252
      %v565 = vpop.permute.xlu0 %564
      %v567 = vmul.f32 %v561, %v565
      %v568 = vmul.f32 %v562, %v565
      %v569 = vadd.f32 %v544, %v567
      %v570 = vadd.f32 %v545, %v568
      %571 = vrot.lane.b32.xlu0 %v242, 111
      %v572 = vpop.permute.xlu0 %571
      %573 = vrot.lane.b32.xlu0 %v243, 111
      %v574 = vpop.permute.xlu0 %573
      %vm575 = vcmp.lt.s32.totalorder %v380, 111
      %v576 = vsel %vm575, %v572, %v574
      %v577 = vsel %vm575, %v574, %v572
      %v578 = vlaneseq
      %v579 = vshrl.u32 %v578, 7
      %v580 = vsub.s32 0, %v579
      %v581 = vrot.slane %v373, %v580
      %v582 = vlaneseq
      %v583 = vshrl.u32 %v582, 7
      %v584 = vsub.s32 0, %v583
      %v585 = vrot.slane %v374, %v584
      %v586 = vmul.f32 %v576, %v581
      %v587 = vmul.f32 %v577, %v585
      %588 = vset.pattern.permute.xlu0 8
      %589 = vperm.xlu0 %588, %v252
      %v590 = vpop.permute.xlu0 %589
      %v592 = vmul.f32 %v586, %v590
      %v593 = vmul.f32 %v587, %v590
      %v594 = vadd.f32 %v569, %v592
      %v595 = vadd.f32 %v570, %v593
      %v596 = vmax.f32 %v594, 0.0
      %v597 = vmax.f32 %v595, 0.0
      %598 = vst [vmem:[%s241] sm:$0xff] %v596
      %599 = vst [vmem:[%s241 + $0x8] sm:$0xff] %v597
      %p600 = scmp.lt.s32.totalorder %s16, 1
      %s601 = scalar_select %p600, %s16, 1
      %s602 = smul.addr %s601, 2
      %s603 = smul.addr %s602, 8
      %s604 = scalar_lea.vmem %s5, %s603
      // Predicated region
      $region41: #{res_block.2} parent=39 // pred_check
        %p605 = pneg %p149
      $region42: #{res_block.2} parent=39 // pred_check_branch
        %607 = sbr.rel (%p605) target = $region44
      $region43: #{res_block.2} parent=39 // pred_region
        _
      $region44: #{res_block.2} parent=39 // pred_fallthru
        _
    $region40: #{res_block.2} parent=5 // pred_fallthru
      _
    %p608 = scmp.le.s32.totalorder 2, %s11
    // Predicated region
    $region45: #{res_block.2} parent=5 // pred_check
      %p609 = pneg %p608
    $region46: #{res_block.2} parent=5 // pred_check_branch
      %611 = sbr.rel (%p609) target = $region48
    $region47: #{res_block.2} parent=5 // pred_region
      %s612 = ssub.s32 %s11, 2
      // Predicated region
      $region49: #{res_block.2} parent=47 // pred_check
        %p613 = pneg %p155
      $region50: #{res_block.2} parent=47 // pred_check_branch
        %615 = sbr.rel (%p613) target = $region52
      $region51: #{res_block.2} parent=47 // pred_region
        %p616 = scmp.lt.s32.totalorder %s17, 1
        %s617 = scalar_select %p616, %s17, 1
        %s618 = smul.addr %s617, 2
        %s619 = smul.addr %s618, 8
        %s620 = scalar_lea.vmem %s5, %s619
      $region52: #{res_block.2} parent=47 // pred_fallthru
        _
    $region48: #{res_block.2} parent=5 // pred_fallthru
      _
  $region6: #{res_block.2} parent=0 // loop_footer
    %s15 = sadd.s32 1, %s11
  $region7: #{res_block.2} parent=0 // loop_footer_branch
    %10 = sbr.rel target = $region3
  $region8: #{res_block.2} parent=0 // loop_exit
    _

// kernel: res_block.3
$region0: #{res_block.3}
  #allocation0 [shape = 'u32[]', space=smem, size = 0x4, offset = 0x4, fixed_abs, tag = 'smem constant byte address 0x4 - core index']
  #allocation1 [shape = 'u32[144,128]{1,0:T(1,128)}', space=vmem, size = 0x12000, scoped, tag = 'internal scratch']
  %s0 = inlined_call_operand.vmem [shape: f32[2,8,256], index: 0, kind: input, shape index: {}]
  %s1 = inlined_call_operand.vmem [shape: f32[9,8], index: 1, kind: input, shape index: {}]
  %s2 = inlined_call_operand.vmem [shape: f32[9,1], index: 2, kind: input, shape index: {}]
  %s3 = inlined_call_operand.vmem [shape: f32[9,256], index: 3, kind: input, shape index: {}]
  %s4 = inlined_call_operand.vmem [shape: f32[2,8,9], index: 4, kind: input, shape index: {}]
  %s5 = inlined_call_operand.vmem [shape: f32[2,8,256], index: 5, kind: input, shape index: {}]
  %s6 = inlined_call_operand.vmem [shape: f32[2,8,256], index: 6, kind: output, shape index: {}]
  %s7 = sld [smem:[#allocation0]]
  $region57: #{res_block.3} parent=0
    _
  %s9 = ssub.s32 1, %s7
  %s10 = scalar_select 0, %s9, %s7
  loop: start=0, step=1, limit=4
  $region2: #{res_block.3} parent=0 // loop_pre_header
    _
  $region3: #{res_block.3} parent=0 // loop_header
    %s12 = sphi 0, %s16
    %p13 = scmp.ge.s32.totalorder %s12, 4
    %s22 = sphi 0, %s24
    %s25 = sphi 0, %s22
    %s26 = sphi 0, %s25
    %s42 = sphi 0, %s26
    %s46 = sphi 0, %s46
    %s48 = sphi 0, %s46
    %s49 = sphi 0, %s48
    %s63 = sphi 0, %s49
    %s67 = sphi 0, %s67
    %s69 = sphi 0, %s67
    %s70 = sphi 0, %s69
    %s84 = sphi 0, %s70
    %s88 = sphi 0, %s88
    %s90 = sphi 0, %s88
    %s91 = sphi 0, %s90
    %s105 = sphi 0, %s91
    %s111 = sphi 0, %s113
    %s114 = sphi 0, %s111
    %s115 = sphi 0, %s114
    %s131 = sphi 0, %s115
    %s137 = sphi 0, %s139
    %s140 = sphi 0, %s137
    %s141 = sphi 0, %s140
    %s157 = sphi 0, %s141
    %s163 = sphi 0, %s165
    %s166 = sphi 0, %s163
    %s167 = sphi 0, %s166
    %s183 = sphi 0, %s167
  $region4: #{res_block.3} parent=0 // loop_header_branch
    %15 = sbr.rel (%p13) target = $region8
  $region5: #{res_block.3} parent=0 // loop_body
    %s17 = ssub.s32 %s12, 1
    %s18 = ssub.s32 %s12, 2
    %s19 = sadd.s32 %s12, 1
    %s20 = ssub.s32 %s12, %s19
    %p21 = scmp.eq.s32.totalorder %s20, 0
    %s23 = sadd.s32 %s22, 1
    %s24 = scalar_select %p21, %s22, %s23
    %p27 = pneg %p21
    %p28 = scmp.eq.s32.totalorder %s12, 1
    %p29 = por %p27, %p28
    %p30 = scmp.ne.s32.totalorder %s22, %s25
    %p31 = scmp.eq.s32.totalorder %s12, 0
    %p32 = por %p30, %p31
    %p33 = scmp.ne.s32.totalorder %s22, %s25
    %p34 = scmp.eq.s32.totalorder %s17, 1
    %p35 = por %p33, %p34
    %p36 = scmp.ne.s32.totalorder %s25, %s26
    %p37 = scmp.eq.s32.totalorder %s17, 0
    %p38 = por %p36, %p37
    %p39 = scmp.ne.s32.totalorder %s25, %s26
    %p40 = scmp.eq.s32.totalorder %s18, 1
    %p41 = por %p39, %p40
    %p43 = scmp.ne.s32.totalorder %s26, %s42
    %p44 = scmp.eq.s32.totalorder %s18, 0
    %p45 = por %p43, %p44
    %s47 = sadd.s32 %s46, 1
    %p50 = scmp.eq.s32.totalorder %s12, 1
    %p51 = scmp.ne.s32.totalorder %s46, %s48
    %p52 = scmp.eq.s32.totalorder %s12, 0
    %p53 = por %p51, %p52
    %p54 = scmp.ne.s32.totalorder %s46, %s48
    %p55 = scmp.eq.s32.totalorder %s17, 1
    %p56 = por %p54, %p55
    %p57 = scmp.ne.s32.totalorder %s48, %s49
    %p58 = scmp.eq.s32.totalorder %s17, 0
    %p59 = por %p57, %p58
    %p60 = scmp.ne.s32.totalorder %s48, %s49
    %p61 = scmp.eq.s32.totalorder %s18, 1
    %p62 = por %p60, %p61
    %p64 = scmp.ne.s32.totalorder %s49, %s63
    %p65 = scmp.eq.s32.totalorder %s18, 0
    %p66 = por %p64, %p65
    %s68 = sadd.s32 %s67, 1
    %p71 = scmp.eq.s32.totalorder %s12, 1
    %p72 = scmp.ne.s32.totalorder %s67, %s69
    %p73 = scmp.eq.s32.totalorder %s12, 0
    %p74 = por %p72, %p73
    %p75 = scmp.ne.s32.totalorder %s67, %s69
    %p76 = scmp.eq.s32.totalorder %s17, 1
    %p77 = por %p75, %p76
    %p78 = scmp.ne.s32.totalorder %s69, %s70
    %p79 = scmp.eq.s32.totalorder %s17, 0
    %p80 = por %p78, %p79
    %p81 = scmp.ne.s32.totalorder %s69, %s70
    %p82 = scmp.eq.s32.totalorder %s18, 1
    %p83 = por %p81, %p82
    %p85 = scmp.ne.s32.totalorder %s70, %s84
    %p86 = scmp.eq.s32.totalorder %s18, 0
    %p87 = por %p85, %p86
    %s89 = sadd.s32 %s88, 1
    %p92 = scmp.eq.s32.totalorder %s12, 1
    %p93 = scmp.ne.s32.totalorder %s88, %s90
    %p94 = scmp.eq.s32.totalorder %s12, 0
    %p95 = por %p93, %p94
    %p96 = scmp.ne.s32.totalorder %s88, %s90
    %p97 = scmp.eq.s32.totalorder %s17, 1
    %p98 = por %p96, %p97
    %p99 = scmp.ne.s32.totalorder %s90, %s91
    %p100 = scmp.eq.s32.totalorder %s17, 0
    %p101 = por %p99, %p100
    %p102 = scmp.ne.s32.totalorder %s90, %s91
    %p103 = scmp.eq.s32.totalorder %s18, 1
    %p104 = por %p102, %p103
    %p106 = scmp.ne.s32.totalorder %s91, %s105
    %p107 = scmp.eq.s32.totalorder %s18, 0
    %p108 = por %p106, %p107
    %s109 = ssub.s32 %s12, %s19
    %p110 = scmp.eq.s32.totalorder %s109, 0
    %s112 = sadd.s32 %s111, 1
    %s113 = scalar_select %p110, %s111, %s112
    %p116 = pneg %p110
    %p117 = scmp.eq.s32.totalorder %s12, 1
    %p118 = por %p116, %p117
    %p119 = scmp.ne.s32.totalorder %s111, %s114
    %p120 = scmp.eq.s32.totalorder %s12, 0
    %p121 = por %p119, %p120
    %p122 = scmp.ne.s32.totalorder %s111, %s114
    %p123 = scmp.eq.s32.totalorder %s17, 1
    %p124 = por %p122, %p123
    %p125 = scmp.ne.s32.totalorder %s114, %s115
    %p126 = scmp.eq.s32.totalorder %s17, 0
    %p127 = por %p125, %p126
    %p128 = scmp.ne.s32.totalorder %s114, %s115
    %p129 = scmp.eq.s32.totalorder %s18, 1
    %p130 = por %p128, %p129
    %p132 = scmp.ne.s32.totalorder %s115, %s131
    %p133 = scmp.eq.s32.totalorder %s18, 0
    %p134 = por %p132, %p133
    %s135 = ssub.s32 %s12, %s19
    %p136 = scmp.eq.s32.totalorder %s135, 0
    %s138 = sadd.s32 %s137, 1
    %s139 = scalar_select %p136, %s137, %s138
    %p142 = pneg %p136
    %p143 = scmp.eq.s32.totalorder %s12, 1
    %p144 = por %p142, %p143
    %p145 = scmp.ne.s32.totalorder %s137, %s140
    %p146 = scmp.eq.s32.totalorder %s12, 0
    %p147 = por %p145, %p146
    %p148 = scmp.ne.s32.totalorder %s137, %s140
    %p149 = scmp.eq.s32.totalorder %s17, 1
    %p150 = por %p148, %p149
    %p151 = scmp.ne.s32.totalorder %s140, %s141
    %p152 = scmp.eq.s32.totalorder %s17, 0
    %p153 = por %p151, %p152
    %p154 = scmp.ne.s32.totalorder %s140, %s141
    %p155 = scmp.eq.s32.totalorder %s18, 1
    %p156 = por %p154, %p155
    %p158 = scmp.ne.s32.totalorder %s141, %s157
    %p159 = scmp.eq.s32.totalorder %s18, 0
    %p160 = por %p158, %p159
    %s161 = ssub.s32 %s12, %s19
    %p162 = scmp.eq.s32.totalorder %s161, 0
    %s164 = sadd.s32 %s163, 1
    %s165 = scalar_select %p162, %s163, %s164
    %p168 = pneg %p162
    %p169 = scmp.eq.s32.totalorder %s12, 1
    %p170 = por %p168, %p169
    %p171 = scmp.ne.s32.totalorder %s163, %s166
    %p172 = scmp.eq.s32.totalorder %s12, 0
    %p173 = por %p171, %p172
    %p174 = scmp.ne.s32.totalorder %s163, %s166
    %p175 = scmp.eq.s32.totalorder %s17, 1
    %p176 = por %p174, %p175
    %p177 = scmp.ne.s32.totalorder %s166, %s167
    %p178 = scmp.eq.s32.totalorder %s17, 0
    %p179 = por %p177, %p178
    %p180 = scmp.ne.s32.totalorder %s166, %s167
    %p181 = scmp.eq.s32.totalorder %s18, 1
    %p182 = por %p180, %p181
    %p184 = scmp.ne.s32.totalorder %s167, %s183
    %p185 = scmp.eq.s32.totalorder %s18, 0
    %p186 = por %p184, %p185
    %p187 = scmp.le.s32.totalorder 1, %s12
    %p188 = scmp.lt.s32.totalorder %s12, 3
    %p189 = pnand %p187, %p188
    %p190 = pneg %p189
    // Predicated region
    $region9: #{res_block.3} parent=5 // pred_check
      _
    $region10: #{res_block.3} parent=5 // pred_check_branch
      %192 = sbr.rel (%p189) target = $region12
    $region11: #{res_block.3} parent=5 // pred_region
      %s193 = ssub.s32 %s12, 1
      // Predicated region
      $region13: #{res_block.3} parent=11 // pred_check
        %p194 = pneg %p59
      $region14: #{res_block.3} parent=11 // pred_check_branch
        %196 = sbr.rel (%p194) target = $region16
      $region15: #{res_block.3} parent=11 // pred_region
        _
      $region16: #{res_block.3} parent=11 // pred_fallthru
        _
      // Predicated region
      $region17: #{res_block.3} parent=11 // pred_check
        %p197 = pneg %p80
      $region18: #{res_block.3} parent=11 // pred_check_branch
        %199 = sbr.rel (%p197) target = $region20
      $region19: #{res_block.3} parent=11 // pred_region
        _
      $region20: #{res_block.3} parent=11 // pred_fallthru
        _
      // Predicated region
      $region21: #{res_block.3} parent=11 // pred_check
        %p200 = pneg %p101
      $region22: #{res_block.3} parent=11 // pred_check_branch
        %202 = sbr.rel (%p200) target = $region24
      $region23: #{res_block.3} parent=11 // pred_region
        _
      $region24: #{res_block.3} parent=11 // pred_fallthru
        _
    $region12: #{res_block.3} parent=5 // pred_fallthru
      _
    %p203 = scmp.lt.s32.totalorder %s12, 2
    // Predicated region
    $region25: #{res_block.3} parent=5 // pred_check
      %p204 = pneg %p203
    $region26: #{res_block.3} parent=5 // pred_check_branch
      %206 = sbr.rel (%p204) target = $region28
    $region27: #{res_block.3} parent=5 // pred_region
      // Predicated region
      $region29: #{res_block.3} parent=27 // pred_check
        %p207 = pneg %p32
      $region30: #{res_block.3} parent=27 // pred_check_branch
        %209 = sbr.rel (%p207) target = $region32
      $region31: #{res_block.3} parent=27 // pred_region
        %p210 = scmp.lt.s32.totalorder %s12, 1
        %s211 = scalar_select %p210, %s12, 1
        %s212 = smul.addr %s211, 2
        %s213 = smul.addr %s212, 8
        %s214 = scalar_lea.vmem %s0, %s213
      $region32: #{res_block.3} parent=27 // pred_fallthru
        _
      // Predicated region
      $region33: #{res_block.3} parent=27 // pred_check
        %p215 = pneg %p121
      $region34: #{res_block.3} parent=27 // pred_check_branch
        %217 = sbr.rel (%p215) target = $region36
      $region35: #{res_block.3} parent=27 // pred_region
        %p218 = scmp.lt.s32.totalorder %s12, 1
        %s219 = scalar_select %p218, %s12, 1
        %s220 = smul.addr %s219, 8
        %s221 = scalar_lea.vmem %s4, %s220
      $region36: #{res_block.3} parent=27 // pred_fallthru
        _
      // Predicated region
      $region37: #{res_block.3} parent=27 // pred_check
        %p222 = pneg %p147
      $region38: #{res_block.3} parent=27 // pred_check_branch
        %224 = sbr.rel (%p222) target = $region40
      $region39: #{res_block.3} parent=27 // pred_region
        %p225 = scmp.lt.s32.totalorder %s12, 1
        %s226 = scalar_select %p225, %s12, 1
        %s227 = smul.addr %s226, 2
        %s228 = smul.addr %s227, 8
        %s229 = scalar_lea.vmem %s5, %s228
      $region40: #{res_block.3} parent=27 // pred_fallthru
        _
    $region28: #{res_block.3} parent=5 // pred_fallthru
      _
    %p230 = scmp.le.s32.totalorder 1, %s12
    %p231 = scmp.lt.s32.totalorder %s12, 3
    %p232 = pnand %p230, %p231
    %p233 = pneg %p232
    // Predicated region
    $region41: #{res_block.3} parent=5 // pred_check
      _
    $region42: #{res_block.3} parent=5 // pred_check_branch
      %235 = sbr.rel (%p232) target = $region44
    $region43: #{res_block.3} parent=5 // pred_region
      %s236 = ssub.s32 %s12, 1
      %p237 = scmp.lt.s32.totalorder %s17, 1
      %s238 = scalar_select %p237, %s17, 1
      %s239 = smul.addr %s238, 2
      %s240 = smul.addr %s239, 8
      %s241 = scalar_lea.vmem %s0, %s240
      %p242 = pneg %p38
      %p243 = pneg %p35
      %p244 = pneg %p59
      %p245 = pneg %p56
      %p246 = pneg %p80
      %p247 = pneg %p77
      %p248 = pneg %p101
      %p249 = pneg %p98
      %p250 = scmp.lt.s32.totalorder %s17, 1
      %s251 = scalar_select %p250, %s17, 1
      %s252 = smul.addr %s251, 8
      %s253 = scalar_lea.vmem %s4, %s252
      %p254 = pneg %p127
      %p255 = pneg %p124
      %p256 = scmp.lt.s32.totalorder %s17, 1
      %s257 = scalar_select %p256, %s17, 1
      %s258 = smul.addr %s257, 2
      %s259 = smul.addr %s258, 8
      %s260 = scalar_lea.vmem %s5, %s259
      %p261 = pneg %p153
      %p262 = pneg %p150
      %p263 = pneg %p179
      %p264 = pneg %p176
      %p265 = scmp.lt.s32.totalorder %s17, 1
      %s266 = scalar_select %p265, %s17, 1
      %s267 = smul.addr %s266, 2
      %s268 = smul.addr %s267, 8
      %s269 = scalar_lea.vmem %s6, %s268
      %p270 = scmp.lt.s32.totalorder %s17, 1
      %s271 = scalar_select %p270, %s17, 1
      %s272 = smul.addr %s271, 2
      %s273 = smul.addr %s272, 8
      %s274 = scalar_lea.vmem %s0, %s273
      %p275 = scmp.lt.s32.totalorder %s17, 1
      %s276 = scalar_select %p275, %s17, 1
      %s277 = smul.addr %s276, 8
      %s278 = scalar_lea.vmem %s4, %s277
      %p279 = scmp.lt.s32.totalorder %s17, 1
      %s280 = scalar_select %p279, %s17, 1
      %s281 = smul.addr %s280, 2
      %s282 = smul.addr %s281, 8
      %s283 = scalar_lea.vmem %s5, %s282
      %p284 = scmp.lt.s32.totalorder %s17, 1
      %s285 = scalar_select %p284, %s17, 1
      %s286 = smul.addr %s285, 2
      %s287 = smul.addr %s286, 8
      %s288 = scalar_lea.vmem %s6, %s287
      %v289 = vld [vmem:[%s274] sm:$0xff]
      %v290 = vld [vmem:[%s274 + $0x8] sm:$0xff]
      %v291 = vld [vmem:[%s1] sm:$0xff]
      %v292 = vld [vmem:[%s1 + $0x8] sm:$0x1]
      %v293 = vld [vmem:[%s2] sm:$0xff]
      %v294 = vld [vmem:[%s2 + $0x8] sm:$0x1]
      %v295 = vld [vmem:[%s3] sm:$0xff]
      %v296 = vld [vmem:[%s3 + $0x8] sm:$0xff]
      %v297 = vld [vmem:[%s3 + $0x10] sm:$0x1]
      %v298 = vld [vmem:[%s3 + $0x18] sm:$0x1]
      %v299 = vld [vmem:[%s278] sm:$0xff]
      %301 = vset.pattern.permute.xlu0 0
      %302 = vperm.xlu0 %301, %v293
      %v303 = vpop.permute.xlu0 %302
      %306 = vset.pattern.permute.xlu0 0
      %307 = vperm.xlu0 %306, %v294
      %v308 = vpop.permute.xlu0 %307
      %vm310 = vcmask 64512
      %v312 = vsel %vm310, %v291, 0
      %v315 = vsel %vm310, %v292, 0
      %317 = vmatprep.subr.mxu0 %v290
      %318 = vmatpush1.msra.mxu0 %v289
      %319 = vmatprep.subr.mxu0 0.0
      %320 = vmatpush1.msra.mxu0 0.0
      %321 = vmatprep.subr.mxu0 0.0
      %322 = vmatpush1.msra.mxu0 0.0
      %323 = vmatprep.subr.mxu0 0.0
      %324 = vmatpush1.msra.mxu0 0.0
      %325 = vmatprep.subr.mxu0 0.0
      %326 = vmatpush1.msra.mxu0 0.0
      %327 = vmatprep.subr.mxu0 0.0
      %328 = vmatpush1.msra.mxu0 0.0
      %329 = vmatprep.subr.mxu0 0.0
      %330 = vmatpush1.msra.mxu0 0.0
      %331 = vmatprep.subr.mxu0 0.0
      %332 = vmatpush1.msra.mxu0 0.0
      %333 = vmatprep.subr.mxu0 0.0
      %334 = vmatpush1.msra.mxu0 0.0
      %335 = vmatprep.subr.mxu0 0.0
      %336 = vmatpush1.msra.mxu0 0.0
      %337 = vmatprep.subr.mxu0 0.0
      %338 = vmatpush1.msra.mxu0 0.0
      %339 = vmatprep.subr.mxu0 0.0
      %340 = vmatpush1.msra.mxu0 0.0
      %341 = vmatprep.subr.mxu0 0.0
      %342 = vmatpush1.msra.mxu0 0.0
      %343 = vmatprep.subr.mxu0 0.0
      %344 = vmatpush1.msra.mxu0 0.0
      %345 = vmatprep.subr.mxu0 0.0
      %346 = vmatpush1.msra.mxu0 0.0
      %347 = vmatprep.subr.mxu0 0.0
      %348 = vmatpush1.msra.mxu0 0.0
      %349 = vmatprep.subr.mxu0 0.0
      %350 = vmatpush1.msra.mxu0 0.0
      %351 = vmatprep.subr.mxu0 0.0
      %352 = vmatpush1.msra.mxu0 0.0
      %353 = vmatprep.subr.mxu0 0.0
      %354 = vmatpush1.msra.mxu0 0.0
      %355 = vmatprep.subr.mxu0 0.0
      %356 = vmatpush1.msra.mxu0 0.0
      %357 = vmatprep.subr.mxu0 0.0
      %358 = vmatpush1.msra.mxu0 0.0
      %359 = vmatprep.subr.mxu0 0.0
      %360 = vmatpush1.msra.mxu0 0.0
      %361 = vmatprep.subr.mxu0 0.0
      %362 = vmatpush1.msra.mxu0 0.0
      %363 = vmatprep.subr.mxu0 0.0
      %364 = vmatpush1.msra.mxu0 0.0
      %365 = vmatprep.subr.mxu0 0.0
      %366 = vmatpush1.msra.mxu0 0.0
      %367 = vmatprep.subr.mxu0 0.0
      %368 = vmatpush1.msra.mxu0 0.0
      %369 = vmatprep.subr.mxu0 0.0
      %370 = vmatpush1.msra.mxu0 0.0
      %371 = vmatprep.subr.mxu0 0.0
      %372 = vmatpush1.msra.mxu0 0.0
      %373 = vmatprep.subr.mxu0 0.0
      %374 = vmatpush1.msra.mxu0 0.0
      %375 = vmatprep.subr.mxu0 0.0
      %376 = vmatpush1.msra.mxu0 0.0
      %377 = vmatprep.subr.mxu0 0.0
      %378 = vmatpush1.msra.mxu0 0.0
      %379 = vmatprep.subr.mxu0 0.0
      %380 = vmatpush1.msra.mxu0 0.0
      %381 = vmatprep.mubr.f32.mxu0 0.0
      %382 = vmatmul.mubr.f32.gmra.mrb[0].mxu0 %v312
      %v383 = vpop.f32.mrb[0].mxu0
      %v384 = vadd.f32 %v303, %v383
      %v385 = vpop.f32.mrb[0].mxu0
      %v386 = vadd.f32 %v303, %v385
      %387 = vmatprep.mubr.f32.mxu0 0.0
      %388 = vmatmul.mubr.f32.gmra.mrb[0].mxu0 %v315
      %v389 = vpop.f32.mrb[0].mxu0
      %v390 = vadd.f32 %v308, %v389
      %v391 = vpop.f32.mrb[0].mxu0
      %v392 = vadd.f32 %v308, %v391
      %393 = vdwg.mxu0
      %v394 = vxor.u32 %v384, 2147483648
      %v395 = vxor.u32 %v386, 2147483648
      %v396 = vxor.u32 %v390, 2147483648
      %v397 = vxor.u32 %v392, 2147483648
      %v398 = vmul.f32 %v394, 1.442695
      %v399 = vpow.pop %v398
      %v400 = vmul.f32 %v395, 1.442695
      %v401 = vpow.pop %v400
      %v402 = vmul.f32 %v396, 1.442695
      %v403 = vpow.pop %v402
      %v404 = vmul.f32 %v397, 1.442695
      %v405 = vpow.pop %v404
      %v406 = vadd.f32 %v399, 1.0
      %v407 = vadd.f32 %v401, 1.0
      %v408 = vadd.f32 %v403, 1.0
      %v409 = vadd.f32 %v405, 1.0
      %v410 = vrcp.pop %v406
      %v411 = vmul.f32 1.0, %v410
      %v412 = vrcp.pop %v407
      %v413 = vmul.f32 1.0, %v412
      %v414 = vrcp.pop %v408
      %v415 = vmul.f32 1.0, %v414
      %v416 = vrcp.pop %v409
      %v417 = vmul.f32 1.0, %v416
      %v418 = vmul.f32 %v411, %v295
      %v419 = vmul.f32 %v413, %v296
      %v420 = vmul.f32 %v415, %v297
      %v421 = vmul.f32 %v417, %v298
      %422 = vrot.lane.b32.xlu0 %v289, 17
      %v423 = vpop.permute.xlu0 %422
      %424 = vrot.lane.b32.xlu0 %v290, 17
      %v425 = vpop.permute.xlu0 %424
      %v426 = vlaneseq
      %v427 = vand.u32 %v426, 127
      %vm428 = vcmp.lt.s32.totalorder %v427, 17
      %v429 = vsel %vm428, %v423, %v425
      %v430 = vsel %vm428, %v425, %v423
      %v431 = vlaneseq
      %v432 = vshrl.u32 %v431, 7
      %v433 = vsub.s32 0, %v432
      %v434 = vrot.slane %v418, %v433
      %v435 = vlaneseq
      %v436 = vshrl.u32 %v435, 7
      %v437 = vsub.s32 0, %v436
      %v438 = vrot.slane %v419, %v437
      %v439 = vmul.f32 %v430, %v434
      %v440 = vmul.f32 %v429, %v438
      %442 = vset.pattern.permute.xlu0 0
      %443 = vperm.xlu0 %442, %v299
      %v444 = vpop.permute.xlu0 %443
      %v446 = vmul.f32 %v439, %v444
      %v447 = vmul.f32 %v440, %v444
      %v448 = vadd.f32 %v446, 0.0
      %v449 = vadd.f32 %v447, 0.0
      %450 = vrot.lane.b32.xlu0 %v289, 16
      %v451 = vpop.permute.xlu0 %450
      %452 = vrot.lane.b32.xlu0 %v290, 16
      %v453 = vpop.permute.xlu0 %452
      %vm454 = vcmp.lt.s32.totalorder %v427, 16
      %v455 = vsel %vm454, %v451, %v453
      %v456 = vsel %vm454, %v453, %v451
      %v457 = vlaneseq
      %v458 = vshrl.u32 %v457, 7
      %v459 = vsub.s32 1, %v458
      %v460 = vrot.slane %v418, %v459
      %v461 = vlaneseq
      %v462 = vshrl.u32 %v461, 7
      %v463 = vsub.s32 1, %v462
      %v464 = vrot.slane %v419, %v463
      %v465 = vmul.f32 %v456, %v460
      %v466 = vmul.f32 %v455, %v464
      %467 = vset.pattern.permute.xlu0 1
      %468 = vperm.xlu0 %467, %v299
      %v469 = vpop.permute.xlu0 %468
      %v471 = vmul.f32 %v465, %v469
      %v472 = vmul.f32 %v466, %v469
      %v473 = vadd.f32 %v448, %v471
      %v474 = vadd.f32 %v449, %v472
      %475 = vrot.lane.b32.xlu0 %v289, 15
      %v476 = vpop.permute.xlu0 %475
      %477 = vrot.lane.b32.xlu0 %v290, 15
      %v478 = vpop.permute.xlu0 %477
      %vm479 = vcmp.lt.s32.totalorder %v427, 15
      %v480 = vsel %vm479, %v476, %v478
      %v481 = vsel %vm479, %v478, %v476
      %v482 = vlaneseq
      %v483 = vshrl.u32 %v482, 7
      %v484 = vsub.s32 2, %v483
      %v485 = vrot.slane %v418, %v484
      %v486 = vlaneseq
      %v487 = vshrl.u32 %v486, 7
      %v488 = vsub.s32 2, %v487
      %v489 = vrot.slane %v419, %v488
      %v490 = vmul.f32 %v481, %v485
      %v491 = vmul.f32 %v480, %v489
      %492 = vset.pattern.permute.xlu0 2
      %493 = vperm.xlu0 %492, %v299
      %v494 = vpop.permute.xlu0 %493
      %v496 = vmul.f32 %v490, %v494
      %v497 = vmul.f32 %v491, %v494
      %v498 = vadd.f32 %v473, %v496
      %v499 = vadd.f32 %v474, %v497
      %500 = vrot.lane.b32.xlu0 %v289, 1
      %v501 = vpop.permute.xlu0 %500
      %502 = vrot.lane.b32.xlu0 %v290, 1
      %v503 = vpop.permute.xlu0 %502
      %vm504 = vcmp.lt.s32.totalorder %v427, 1
      %v505 = vsel %vm504, %v501, %v503
      %v506 = vsel %vm504, %v503, %v501
      %v507 = vlaneseq
      %v508 = vshrl.u32 %v507, 7
      %v509 = vsub.s32 3, %v508
      %v510 = vrot.slane %v418, %v509
      %v511 = vlaneseq
      %v512 = vshrl.u32 %v511, 7
      %v513 = vsub.s32 3, %v512
      %v514 = vrot.slane %v419, %v513
      %v515 = vmul.f32 %v506, %v510
      %v516 = vmul.f32 %v505, %v514
      %517 = vset.pattern.permute.xlu0 3
      %518 = vperm.xlu0 %517, %v299
      %v519 = vpop.permute.xlu0 %518
      %v521 = vmul.f32 %v515, %v519
      %v522 = vmul.f32 %v516, %v519
      %v523 = vadd.f32 %v498, %v521
      %v524 = vadd.f32 %v499, %v522
      %v525 = vlaneseq
      %v526 = vshrl.u32 %v525, 7
      %v527 = vsub.s32 4, %v526
      %v528 = vrot.slane %v418, %v527
      %v529 = vlaneseq
      %v530 = vshrl.u32 %v529, 7
      %v531 = vsub.s32 4, %v530
      %v532 = vrot.slane %v419, %v531
      %v533 = vmul.f32 %v289, %v528
      %v534 = vmul.f32 %v290, %v532
      %535 = vset.pattern.permute.xlu0 4
      %536 = vperm.xlu0 %535, %v299
      %v537 = vpop.permute.xlu0 %536
      %v539 = vmul.f32 %v533, %v537
      %v540 = vmul.f32 %v534, %v537
      %v541 = vadd.f32 %v523, %v539
      %v542 = vadd.f32 %v524, %v540
      %543 = vrot.lane.b32.xlu0 %v289, 127
      %v544 = vpop.permute.xlu0 %543
      %545 = vrot.lane.b32.xlu0 %v290, 127
      %v546 = vpop.permute.xlu0 %545
      %vm547 = vcmp.lt.s32.totalorder %v427, 127
      %v548 = vsel %vm547, %v544, %v546
      %v549 = vsel %vm547, %v546, %v544
      %v550 = vlaneseq
      %v551 = vshrl.u32 %v550, 7
      %v552 = vsub.s32 5, %v551
      %v553 = vrot.slane %v418, %v552
      %v554 = vlaneseq
      %v555 = vshrl.u32 %v554, 7
      %v556 = vsub.s32 5, %v555
      %v557 = vrot.slane %v419, %v556
      %v558 = vmul.f32 %v548, %v553
      %v559 = vmul.f32 %v549, %v557
      %560 = vset.pattern.permute.xlu0 5
      %561 = vperm.xlu0 %560, %v299
      %v562 = vpop.permute.xlu0 %561
      %v564 = vmul.f32 %v558, %v562
      %v565 = vmul.f32 %v559, %v562
      %v566 = vadd.f32 %v541, %v564
      %v567 = vadd.f32 %v542, %v565
      %568 = vrot.lane.b32.xlu0 %v289, 113
      %v569 = vpop.permute.xlu0 %568
      %570 = vrot.lane.b32.xlu0 %v290, 113
      %v571 = vpop.permute.xlu0 %570
      %vm572 = vcmp.lt.s32.totalorder %v427, 113
      %v573 = vsel %vm572, %v569, %v571
      %v574 = vsel %vm572, %v571, %v569
      %v575 = vlaneseq
      %v576 = vshrl.u32 %v575, 7
      %v577 = vsub.s32 6, %v576
      %v578 = vrot.slane %v418, %v577
      %v579 = vlaneseq
      %v580 = vshrl.u32 %v579, 7
      %v581 = vsub.s32 6, %v580
      %v582 = vrot.slane %v419, %v581
      %v583 = vmul.f32 %v573, %v578
      %v584 = vmul.f32 %v574, %v582
      %585 = vset.pattern.permute.xlu0 6
      %586 = vperm.xlu0 %585, %v299
      %v587 = vpop.permute.xlu0 %586
      %v589 = vmul.f32 %v583, %v587
      %v590 = vmul.f32 %v584, %v587
      %v591 = vadd.f32 %v566, %v589
      %v592 = vadd.f32 %v567, %v590
      %593 = vrot.lane.b32.xlu0 %v289, 112
      %v594 = vpop.permute.xlu0 %593
      %595 = vrot.lane.b32.xlu0 %v290, 112
      %v596 = vpop.permute.xlu0 %595
      %vm597 = vcmp.lt.s32.totalorder %v427, 112
      %v598 = vsel %vm597, %v594, %v596
      %v599 = vsel %vm597, %v596, %v594
      %v600 = vlaneseq
      %v601 = vshrl.u32 %v600, 7
      %v602 = vsub.s32 7, %v601
      %v603 = vrot.slane %v418, %v602
      %v604 = vlaneseq
      %v605 = vshrl.u32 %v604, 7
      %v606 = vsub.s32 7, %v605
      %v607 = vrot.slane %v419, %v606
      %v608 = vmul.f32 %v598, %v603
      %v609 = vmul.f32 %v599, %v607
      %610 = vset.pattern.permute.xlu0 7
      %611 = vperm.xlu0 %610, %v299
      %v612 = vpop.permute.xlu0 %611
      %v614 = vmul.f32 %v608, %v612
      %v615 = vmul.f32 %v609, %v612
      %v616 = vadd.f32 %v591, %v614
      %v617 = vadd.f32 %v592, %v615
      %618 = vrot.lane.b32.xlu0 %v289, 111
      %v619 = vpop.permute.xlu0 %618
      %620 = vrot.lane.b32.xlu0 %v290, 111
      %v621 = vpop.permute.xlu0 %620
      %vm622 = vcmp.lt.s32.totalorder %v427, 111
      %v623 = vsel %vm622, %v619, %v621
      %v624 = vsel %vm622, %v621, %v619
      %v625 = vlaneseq
      %v626 = vshrl.u32 %v625, 7
      %v627 = vsub.s32 0, %v626
      %v628 = vrot.slane %v420, %v627
      %v629 = vlaneseq
      %v630 = vshrl.u32 %v629, 7
      %v631 = vsub.s32 0, %v630
      %v632 = vrot.slane %v421, %v631
      %v633 = vmul.f32 %v623, %v628
      %v634 = vmul.f32 %v624, %v632
      %635 = vset.pattern.permute.xlu0 8
      %636 = vperm.xlu0 %635, %v299
      %v637 = vpop.permute.xlu0 %636
      %v639 = vmul.f32 %v633, %v637
      %v640 = vmul.f32 %v634, %v637
      %v641 = vadd.f32 %v616, %v639
      %v642 = vadd.f32 %v617, %v640
      %v643 = vld [vmem:[%s283] sm:$0xff]
      %v644 = vld [vmem:[%s283 + $0x8] sm:$0xff]
      %v645 = vadd.f32 %v641, %v643
      %v646 = vadd.f32 %v642, %v644
      %647 = vst [vmem:[%s288] sm:$0xff] %v645
      %648 = vst [vmem:[%s288 + $0x8] sm:$0xff] %v646
      %p649 = scmp.lt.s32.totalorder %s17, 1
      %s650 = scalar_select %p649, %s17, 1
      %s651 = smul.addr %s650, 2
      %s652 = smul.addr %s651, 8
      %s653 = scalar_lea.vmem %s6, %s652
      // Predicated region
      $region45: #{res_block.3} parent=43 // pred_check
        %p654 = pneg %p176
      $region46: #{res_block.3} parent=43 // pred_check_branch
        %656 = sbr.rel (%p654) target = $region48
      $region47: #{res_block.3} parent=43 // pred_region
        _
      $region48: #{res_block.3} parent=43 // pred_fallthru
        _
    $region44: #{res_block.3} parent=5 // pred_fallthru
      _
    %p657 = scmp.le.s32.totalorder 2, %s12
    // Predicated region
    $region49: #{res_block.3} parent=5 // pred_check
      %p658 = pneg %p657
    $region50: #{res_block.3} parent=5 // pred_check_branch
      %660 = sbr.rel (%p658) target = $region52
    $region51: #{res_block.3} parent=5 // pred_region
      %s661 = ssub.s32 %s12, 2
      // Predicated region
      $region53: #{res_block.3} parent=51 // pred_check
        %p662 = pneg %p182
      $region54: #{res_block.3} parent=51 // pred_check_branch
        %664 = sbr.rel (%p662) target = $region56
      $region55: #{res_block.3} parent=51 // pred_region
        %p665 = scmp.lt.s32.totalorder %s18, 1
        %s666 = scalar_select %p665, %s18, 1
        %s667 = smul.addr %s666, 2
        %s668 = smul.addr %s667, 8
        %s669 = scalar_lea.vmem %s6, %s668
      $region56: #{res_block.3} parent=51 // pred_fallthru
        _
    $region52: #{res_block.3} parent=5 // pred_fallthru
      _
  $region6: #{res_block.3} parent=0 // loop_footer
    %s16 = sadd.s32 1, %s12
  $region7: #{res_block.3} parent=0 // loop_footer_branch
    %11 = sbr.rel target = $region3
  $region8: #{res_block.3} parent=0 // loop_exit
    _

</llo_original>
